<compile_context>
chip_gen: v5e
topology: v5e:2x2
jax: 0.10.0
libtpu: 0.0.40
codegen_flags: <defaults>
</compile_context>

<pallas_src>
import functools

import jax
import jax.numpy as jnp
from jax.experimental import pallas as pl
from jax.experimental.pallas import tpu as pltpu


def attention_gate_kernel(g_ref, x_ref, wg_ref, wx_ref, b1_ref, wp_ref, bp_ref,
                          out_ref, *, use_mxu, approx_sigmoid):
    """Blocks: g (1, Cg, T), x (1, Cx, T), out (1, Cx, T).

    Weights (VMEM, tiny, constant across the grid):
      wg (Ci, Cg), wx (Ci, Cx), b1 (Ci, 1) = bg+bx folded, wp (Ci, 1), bp (1, 1).
    Voxels live on the lane axis (T is a multiple of 128 except for the final
    clipped tail block; garbage tail columns feed exp/sigmoid but are never
    written back, so valid output is unaffected).
    """
    # Cast the whole g/x blocks to f32 ONCE (hoisted out of any per-channel loop).
    gf = g_ref[0].astype(jnp.float32)                            # (Cg, T)
    xf = x_ref[0].astype(jnp.float32)                            # (Cx, T)

    if use_mxu:
        # a = relu(Wg @ g + Wx @ x + (bg + bx)) on the MXU (vex slot), f32 acc.
        pre = (jnp.dot(wg_ref[...], gf, preferred_element_type=jnp.float32)
               + jnp.dot(wx_ref[...], xf, preferred_element_type=jnp.float32)
               + b1_ref[...])
    else:
        # Tiny channel counts: unrolled VPU outer-product accumulation.
        Ci, Cg = wg_ref.shape
        Cx = wx_ref.shape[1]
        acc = b1_ref[...]                                        # (Ci, 1)
        for cg in range(Cg):
            acc = acc + wg_ref[:, cg:cg + 1] * gf[cg:cg + 1, :]  # (Ci, T)
        for cx in range(Cx):
            acc = acc + wx_ref[:, cx:cx + 1] * xf[cx:cx + 1, :]
        pre = acc
    a = jnp.maximum(pre, 0.0)                                    # (Ci, T)

    # psi = sigmoid(Wp @ a + bp) -> (1, T); sublane reduce on the XLU, exp on EUP.
    logit = bp_ref[...] + jnp.sum(a * wp_ref[...], axis=0, keepdims=True)
    denom = 1.0 + jnp.exp(-logit)
    if approx_sigmoid:
        psi = pl.reciprocal(denom, approx=True)                  # EUP vrcp (cheap)
    else:
        psi = 1.0 / denom                                        # exact divide

    # Gate: broadcast (1, T) across the Cx sublanes of x.
    out_ref[0] = (xf * psi).astype(out_ref.dtype)


def fold_bn_into_conv(w, b, gamma, beta, mean, var, eps=1e-5):
    """Fold eval-mode BatchNorm into a preceding 1x1x1 conv.

    w: (Cout, Cin), b: (Cout,) -> (w', b') with same shapes.
    """
    scale = gamma / jnp.sqrt(var + eps)
    return w * scale[:, None], scale * (b - mean) + beta


def _vmem_capacity_bytes():
    """Physical VMEM per TensorCore (generation-aware, conservative fallback)."""
    try:
        return int(pltpu.get_tpu_info().vmem_capacity_bytes)
    except Exception:
        return 64 << 20            # v7x per-TC VMEM; safe lower bound everywhere


def _pick_tile_cols(S, B, bytes_per_col, vmem_budget, *, tile_cols=None,
                    min_grid_steps=4):
    """Largest lane-dense (multiple-of-128) spatial tile that
       * fits the VMEM working-set budget,
       * respects an optional user cap (tile_cols),
       * keeps B * num_tiles >= min_grid_steps (>= 2 steps per v7x TensorCore).
    A tile equal to the full spatial extent S is always a legal block shape.
    """
    if S <= 128:
        return S
    max_by_vmem = max(128, (int(vmem_budget) // max(int(bytes_per_col), 1))
                      // 128 * 128)
    min_tiles = -(-int(min_grid_steps) // max(int(B), 1))         # ceil
    if min_tiles > 1:
        max_by_parallel = max(128, (S // min_tiles) // 128 * 128)
    else:
        max_by_parallel = S
    tile = min(max_by_vmem, max_by_parallel, S)
    if tile_cols is not None:
        tile = min(tile, int(tile_cols))
    if tile >= S:
        return S
    return max(128, (tile // 128) * 128)


def attention_gate(g, x, params, *, tile_cols=None, mxu_channel_threshold=32,
                   approx_sigmoid=True):
    """g: [B, Cg, D, H, W], x: [B, Cx, D, H, W] -> [B, Cx, D, H, W]."""
    B, Cg, D, H, W = g.shape
    _, Cx, _, _, _ = x.shape
    S = D * H * W

    # Native layout: just flatten spatial dims (contiguous reshape, no HBM pass).
    g3 = g.reshape(B, Cg, S)
    x3 = x.reshape(B, Cx, S)

    wg, wx, b1, wp, bp = params
    Ci = wg.shape[0]

    in_itemsize = jnp.dtype(x.dtype).itemsize
    # Per-voxel-column VMEM: double-buffered g/x/out tiles + f32 intermediates
    # (gf, xf, pre/a, psi/logit rows, out cast) -- conservative count.
    bytes_per_col = (2 * (Cg + 2 * Cx) * in_itemsize
                     + (Cg + 2 * Cx + 2 * Ci + 2) * 4)

    vmem_cap = _vmem_capacity_bytes()
    vmem_budget = vmem_cap // 2                 # ~32 MiB on v7x, ~64 MiB on v5e/v6e
    vmem_limit = int(min(vmem_cap - (4 << 20), vmem_budget + (16 << 20)))

    tile = _pick_tile_cols(S, B, bytes_per_col, vmem_budget,
                           tile_cols=tile_cols, min_grid_steps=4)

    # Tail tiles (S % tile != 0) are handled by Pallas block clipping; the math
    # is per-voxel-column, so padded columns never contaminate valid output.
    grid = (B, pl.cdiv(S, tile))
    vox_map = lambda b, t: (b, 0, t)
    const_map = lambda b, t: (0, 0)

    use_mxu = (Cg + Cx) >= mxu_channel_threshold
    kernel = functools.partial(attention_gate_kernel,
                               use_mxu=use_mxu,
                               approx_sigmoid=approx_sigmoid)

    cost = pl.CostEstimate(
        flops=int(2 * (Cg + Cx + 1) * Ci * B * S + 2 * Cx * B * S),
        transcendentals=int(B * S),
        bytes_accessed=int((Cg + 2 * Cx) * B * S * in_itemsize),
    )

    out3 = pl.pallas_call(
        kernel,
        out_shape=jax.ShapeDtypeStruct((B, Cx, S), x.dtype),
        grid_spec=pltpu.PrefetchScalarGridSpec(
            num_scalar_prefetch=0,
            grid=grid,
            in_specs=[
                pl.BlockSpec((1, Cg, tile), vox_map),    # g tile (lane-dense)
                pl.BlockSpec((1, Cx, tile), vox_map),    # x tile (lane-dense)
                pl.BlockSpec((Ci, Cg), const_map),       # Wg (BN-folded)
                pl.BlockSpec((Ci, Cx), const_map),       # Wx (BN-folded)
                pl.BlockSpec((Ci, 1), const_map),        # bg + bx (folded)
                pl.BlockSpec((Ci, 1), const_map),        # Wpsi (folded)
                pl.BlockSpec((1, 1), const_map),         # bpsi (folded)
            ],
            out_specs=pl.BlockSpec((1, Cx, tile), vox_map),
        ),
        compiler_params=pltpu.CompilerParams(
            dimension_semantics=("parallel", "parallel"),
            vmem_limit_bytes=vmem_limit,
        ),
        cost_estimate=cost,
    )(g3, x3, wg, wx, b1, wp, bp)

    return out3.reshape(B, Cx, D, H, W)


def make_params(key, gate_channels, feat_channels, inter_channels=None, eps=1e-5):
    """Deterministic synthetic params matching AttentionGate.__init__ shapes,
    with eval-mode BN folded in and repacked for the channel-major kernel."""
    if inter_channels is None:
        inter_channels = gate_channels // 2
    Ci = inter_channels
    ks = jax.random.split(key, 9)

    def conv(kw, kb, cout, cin):
        w = 0.1 * jax.random.normal(kw, (cout, cin), jnp.float32)
        b = 0.1 * jax.random.normal(kb, (cout,), jnp.float32)
        return w, b

    def bn(k, c):
        kg, kb, km, kv = jax.random.split(k, 4)
        gamma = 1.0 + 0.1 * jax.random.normal(kg, (c,), jnp.float32)
        beta = 0.1 * jax.random.normal(kb, (c,), jnp.float32)
        mean = 0.1 * jax.random.normal(km, (c,), jnp.float32)
        var = jnp.abs(jax.random.normal(kv, (c,), jnp.float32)) + 0.5
        return gamma, beta, mean, var

    # W_g: Conv3d(Cg -> Ci, k=1) + BN(Ci)
    wg, bg = conv(ks[0], ks[1], Ci, gate_channels)
    wg, bg = fold_bn_into_conv(wg, bg, *bn(ks[2], Ci), eps=eps)
    # W_x: Conv3d(Cx -> Ci, k=1) + BN(Ci)
    wx, bx = conv(ks[3], ks[4], Ci, feat_channels)
    wx, bx = fold_bn_into_conv(wx, bx, *bn(ks[5], Ci), eps=eps)
    # psi: Conv3d(Ci -> 1, k=1) + BN(1) + Sigmoid
    wp, bp = conv(ks[6], ks[7], 1, Ci)
    wp, bp = fold_bn_into_conv(wp, bp, *bn(ks[8], 1), eps=eps)

    b1 = (bg + bx)[:, None]                  # (Ci, 1) — biases always appear summed
    return (wg, wx, b1, wp.T, bp[:, None])   # wg (Ci,Cg), wx (Ci,Cx), wp (Ci,1), bp (1,1)


def attention_gate_ref(g, x, params):
    """Pure-JAX reference on the native NCDHW layout (same folded params)."""
    wg, wx, b1, wp, bp = params
    pre = (jnp.einsum('ic,bcdhw->bidhw', wg, g)
           + jnp.einsum('ic,bcdhw->bidhw', wx, x)
           + b1.reshape(1, -1, 1, 1, 1))
    a = jnp.maximum(pre, 0.0)
    logit = jnp.einsum('i,bidhw->bdhw', wp[:, 0], a)[:, None] + bp.reshape(1, 1, 1, 1, 1)
    psi = jax.nn.sigmoid(logit)
    return x * psi


if __name__ == "__main__":
    key = jax.random.PRNGKey(0)
    k1, k2 = jax.random.split(key)

    # --- Test 1: tiny channel counts -> VPU outer-product path, exact sigmoid ---
    k_g, k_x, k_p = jax.random.split(k1, 3)
    B, Cg, Cx = 2, 8, 4
    D = H = W = 16                       # S = 4096 voxels/batch
    g = jax.random.normal(k_g, (B, Cg, D, H, W), jnp.float32)
    x = jax.random.normal(k_x, (B, Cx, D, H, W), jnp.float32)
    params = make_params(k_p, gate_channels=Cg, feat_channels=Cx)

    out = jax.block_until_ready(attention_gate(g, x, params, approx_sigmoid=False))
    ref = attention_gate_ref(g, x, params)
    assert out.shape == x.shape
    assert jnp.allclose(out, ref, atol=1e-5, rtol=1e-5), \
        float(jnp.max(jnp.abs(out - ref)))

    # --- Test 2: larger channel counts -> MXU dot path, approx EUP sigmoid ---
    # (looser tolerance: MXU default precision + approximate reciprocal in psi)
    k_g2, k_x2, k_p2 = jax.random.split(k2, 3)
    B2, Cg2, Cx2 = 2, 32, 32
    D2 = H2 = W2 = 8                     # S = 512 voxels/batch
    g2 = jax.random.normal(k_g2, (B2, Cg2, D2, H2, W2), jnp.float32)
    x2 = jax.random.normal(k_x2, (B2, Cx2, D2, H2, W2), jnp.float32)
    params2 = make_params(k_p2, gate_channels=Cg2, feat_channels=Cx2)

    out2 = jax.block_until_ready(attention_gate(g2, x2, params2))
    ref2 = attention_gate_ref(g2, x2, params2)
    assert out2.shape == x2.shape
    assert jnp.allclose(out2, ref2, atol=2e-2, rtol=2e-2), \
        float(jnp.max(jnp.abs(out2 - ref2)))

    print("KERNEL_OK")
</pallas_src>

<mosaic_0001>
module attributes {stable_mosaic.version = 11 : i64} {
  func.func @attention_gate_kernel(%arg0: i32, %arg1: i32, %arg2: memref<1x8x2048xf32, #tpu.memory_space<vmem>>, %arg3: memref<1x4x2048xf32, #tpu.memory_space<vmem>>, %arg4: memref<4x8xf32, #tpu.memory_space<vmem>>, %arg5: memref<4x4xf32, #tpu.memory_space<vmem>>, %arg6: memref<4x1xf32, #tpu.memory_space<vmem>>, %arg7: memref<4x1xf32, #tpu.memory_space<vmem>>, %arg8: memref<1x1xf32, #tpu.memory_space<vmem>>, %arg9: memref<1x4x2048xf32, #tpu.memory_space<vmem>>) attributes {dimension_semantics = [#tpu.dimension_semantics<parallel>, #tpu.dimension_semantics<parallel>], iteration_bounds = array<i64: 2, 2>, scalar_prefetch = 0 : i64, scratch_operands = 0 : i64, tpu.core_type = #tpu.core_type<tc>, window_params = [{transform_indices = @transform_0, window_bounds = array<i64: 1, 8, 2048>}, {transform_indices = @transform_1, window_bounds = array<i64: 1, 4, 2048>}, {pipeline_mode = #tpu.pipeline_mode<synchronous>, transform_indices = @transform_2, window_bounds = array<i64: 4, 8>}, {pipeline_mode = #tpu.pipeline_mode<synchronous>, transform_indices = @transform_3, window_bounds = array<i64: 4, 4>}, {pipeline_mode = #tpu.pipeline_mode<synchronous>, transform_indices = @transform_4, window_bounds = array<i64: 4, 1>}, {pipeline_mode = #tpu.pipeline_mode<synchronous>, transform_indices = @transform_5, window_bounds = array<i64: 4, 1>}, {pipeline_mode = #tpu.pipeline_mode<synchronous>, transform_indices = @transform_6, window_bounds = array<i64: 1, 1>}, {transform_indices = @transform_7, window_bounds = array<i64: 1, 4, 2048>}]} {
    %c0 = arith.constant 0 : index
    %c0_0 = arith.constant 0 : index
    %c0_1 = arith.constant 0 : index
    %0 = vector.load %arg2[%c0, %c0_0, %c0_1] : memref<1x8x2048xf32, #tpu.memory_space<vmem>>, vector<1x8x2048xf32>
    %1 = vector.shape_cast %0 : vector<1x8x2048xf32> to vector<8x2048xf32>
    %c0_2 = arith.constant 0 : index
    %c0_3 = arith.constant 0 : index
    %c0_4 = arith.constant 0 : index
    %2 = vector.load %arg3[%c0_2, %c0_3, %c0_4] : memref<1x4x2048xf32, #tpu.memory_space<vmem>>, vector<1x4x2048xf32>
    %3 = vector.shape_cast %2 : vector<1x4x2048xf32> to vector<4x2048xf32>
    %c0_5 = arith.constant 0 : index
    %c0_6 = arith.constant 0 : index
    %4 = vector.load %arg6[%c0_5, %c0_6] : memref<4x1xf32, #tpu.memory_space<vmem>>, vector<4x1xf32>
    %c0_7 = arith.constant 0 : index
    %c0_8 = arith.constant 0 : index
    %5 = vector.load %arg4[%c0_7, %c0_8] : memref<4x8xf32, #tpu.memory_space<vmem>>, vector<4x1xf32>
    %6 = vector.extract_strided_slice %1 {offsets = [0, 0], sizes = [1, 2048], strides = [1, 1]} : vector<8x2048xf32> to vector<1x2048xf32>
    %7 = vector.broadcast %5 : vector<4x1xf32> to vector<4x2048xf32>
    %8 = vector.broadcast %6 : vector<1x2048xf32> to vector<4x2048xf32>
    %9 = arith.mulf %7, %8 : vector<4x2048xf32>
    %10 = vector.broadcast %4 : vector<4x1xf32> to vector<4x2048xf32>
    %11 = arith.addf %10, %9 : vector<4x2048xf32>
    %c0_9 = arith.constant 0 : index
    %c1 = arith.constant 1 : index
    %12 = vector.load %arg4[%c0_9, %c1] : memref<4x8xf32, #tpu.memory_space<vmem>>, vector<4x1xf32>
    %13 = vector.extract_strided_slice %1 {offsets = [1, 0], sizes = [1, 2048], strides = [1, 1]} : vector<8x2048xf32> to vector<1x2048xf32>
    %14 = vector.broadcast %12 : vector<4x1xf32> to vector<4x2048xf32>
    %15 = vector.broadcast %13 : vector<1x2048xf32> to vector<4x2048xf32>
    %16 = arith.mulf %14, %15 : vector<4x2048xf32>
    %17 = arith.addf %11, %16 : vector<4x2048xf32>
    %c0_10 = arith.constant 0 : index
    %c2 = arith.constant 2 : index
    %18 = vector.load %arg4[%c0_10, %c2] : memref<4x8xf32, #tpu.memory_space<vmem>>, vector<4x1xf32>
    %19 = vector.extract_strided_slice %1 {offsets = [2, 0], sizes = [1, 2048], strides = [1, 1]} : vector<8x2048xf32> to vector<1x2048xf32>
    %20 = vector.broadcast %18 : vector<4x1xf32> to vector<4x2048xf32>
    %21 = vector.broadcast %19 : vector<1x2048xf32> to vector<4x2048xf32>
    %22 = arith.mulf %20, %21 : vector<4x2048xf32>
    %23 = arith.addf %17, %22 : vector<4x2048xf32>
    %c0_11 = arith.constant 0 : index
    %c3 = arith.constant 3 : index
    %24 = vector.load %arg4[%c0_11, %c3] : memref<4x8xf32, #tpu.memory_space<vmem>>, vector<4x1xf32>
    %25 = vector.extract_strided_slice %1 {offsets = [3, 0], sizes = [1, 2048], strides = [1, 1]} : vector<8x2048xf32> to vector<1x2048xf32>
    %26 = vector.broadcast %24 : vector<4x1xf32> to vector<4x2048xf32>
    %27 = vector.broadcast %25 : vector<1x2048xf32> to vector<4x2048xf32>
    %28 = arith.mulf %26, %27 : vector<4x2048xf32>
    %29 = arith.addf %23, %28 : vector<4x2048xf32>
    %c0_12 = arith.constant 0 : index
    %c4 = arith.constant 4 : index
    %30 = vector.load %arg4[%c0_12, %c4] : memref<4x8xf32, #tpu.memory_space<vmem>>, vector<4x1xf32>
    %31 = vector.extract_strided_slice %1 {offsets = [4, 0], sizes = [1, 2048], strides = [1, 1]} : vector<8x2048xf32> to vector<1x2048xf32>
    %32 = vector.broadcast %30 : vector<4x1xf32> to vector<4x2048xf32>
    %33 = vector.broadcast %31 : vector<1x2048xf32> to vector<4x2048xf32>
    %34 = arith.mulf %32, %33 : vector<4x2048xf32>
    %35 = arith.addf %29, %34 : vector<4x2048xf32>
    %c0_13 = arith.constant 0 : index
    %c5 = arith.constant 5 : index
    %36 = vector.load %arg4[%c0_13, %c5] : memref<4x8xf32, #tpu.memory_space<vmem>>, vector<4x1xf32>
    %37 = vector.extract_strided_slice %1 {offsets = [5, 0], sizes = [1, 2048], strides = [1, 1]} : vector<8x2048xf32> to vector<1x2048xf32>
    %38 = vector.broadcast %36 : vector<4x1xf32> to vector<4x2048xf32>
    %39 = vector.broadcast %37 : vector<1x2048xf32> to vector<4x2048xf32>
    %40 = arith.mulf %38, %39 : vector<4x2048xf32>
    %41 = arith.addf %35, %40 : vector<4x2048xf32>
    %c0_14 = arith.constant 0 : index
    %c6 = arith.constant 6 : index
    %42 = vector.load %arg4[%c0_14, %c6] : memref<4x8xf32, #tpu.memory_space<vmem>>, vector<4x1xf32>
    %43 = vector.extract_strided_slice %1 {offsets = [6, 0], sizes = [1, 2048], strides = [1, 1]} : vector<8x2048xf32> to vector<1x2048xf32>
    %44 = vector.broadcast %42 : vector<4x1xf32> to vector<4x2048xf32>
    %45 = vector.broadcast %43 : vector<1x2048xf32> to vector<4x2048xf32>
    %46 = arith.mulf %44, %45 : vector<4x2048xf32>
    %47 = arith.addf %41, %46 : vector<4x2048xf32>
    %c0_15 = arith.constant 0 : index
    %c7 = arith.constant 7 : index
    %48 = vector.load %arg4[%c0_15, %c7] : memref<4x8xf32, #tpu.memory_space<vmem>>, vector<4x1xf32>
    %49 = vector.extract_strided_slice %1 {offsets = [7, 0], sizes = [1, 2048], strides = [1, 1]} : vector<8x2048xf32> to vector<1x2048xf32>
    %50 = vector.broadcast %48 : vector<4x1xf32> to vector<4x2048xf32>
    %51 = vector.broadcast %49 : vector<1x2048xf32> to vector<4x2048xf32>
    %52 = arith.mulf %50, %51 : vector<4x2048xf32>
    %53 = arith.addf %47, %52 : vector<4x2048xf32>
    %c0_16 = arith.constant 0 : index
    %c0_17 = arith.constant 0 : index
    %54 = vector.load %arg5[%c0_16, %c0_17] : memref<4x4xf32, #tpu.memory_space<vmem>>, vector<4x1xf32>
    %55 = vector.extract_strided_slice %3 {offsets = [0, 0], sizes = [1, 2048], strides = [1, 1]} : vector<4x2048xf32> to vector<1x2048xf32>
    %56 = vector.broadcast %54 : vector<4x1xf32> to vector<4x2048xf32>
    %57 = vector.broadcast %55 : vector<1x2048xf32> to vector<4x2048xf32>
    %58 = arith.mulf %56, %57 : vector<4x2048xf32>
    %59 = arith.addf %53, %58 : vector<4x2048xf32>
    %c0_18 = arith.constant 0 : index
    %c1_19 = arith.constant 1 : index
    %60 = vector.load %arg5[%c0_18, %c1_19] : memref<4x4xf32, #tpu.memory_space<vmem>>, vector<4x1xf32>
    %61 = vector.extract_strided_slice %3 {offsets = [1, 0], sizes = [1, 2048], strides = [1, 1]} : vector<4x2048xf32> to vector<1x2048xf32>
    %62 = vector.broadcast %60 : vector<4x1xf32> to vector<4x2048xf32>
    %63 = vector.broadcast %61 : vector<1x2048xf32> to vector<4x2048xf32>
    %64 = arith.mulf %62, %63 : vector<4x2048xf32>
    %65 = arith.addf %59, %64 : vector<4x2048xf32>
    %c0_20 = arith.constant 0 : index
    %c2_21 = arith.constant 2 : index
    %66 = vector.load %arg5[%c0_20, %c2_21] : memref<4x4xf32, #tpu.memory_space<vmem>>, vector<4x1xf32>
    %67 = vector.extract_strided_slice %3 {offsets = [2, 0], sizes = [1, 2048], strides = [1, 1]} : vector<4x2048xf32> to vector<1x2048xf32>
    %68 = vector.broadcast %66 : vector<4x1xf32> to vector<4x2048xf32>
    %69 = vector.broadcast %67 : vector<1x2048xf32> to vector<4x2048xf32>
    %70 = arith.mulf %68, %69 : vector<4x2048xf32>
    %71 = arith.addf %65, %70 : vector<4x2048xf32>
    %c0_22 = arith.constant 0 : index
    %c3_23 = arith.constant 3 : index
    %72 = vector.load %arg5[%c0_22, %c3_23] : memref<4x4xf32, #tpu.memory_space<vmem>>, vector<4x1xf32>
    %73 = vector.extract_strided_slice %3 {offsets = [3, 0], sizes = [1, 2048], strides = [1, 1]} : vector<4x2048xf32> to vector<1x2048xf32>
    %74 = vector.broadcast %72 : vector<4x1xf32> to vector<4x2048xf32>
    %75 = vector.broadcast %73 : vector<1x2048xf32> to vector<4x2048xf32>
    %76 = arith.mulf %74, %75 : vector<4x2048xf32>
    %77 = arith.addf %71, %76 : vector<4x2048xf32>
    %cst = arith.constant 0.000000e+00 : f32
    %78 = vector.broadcast %cst : f32 to vector<4x2048xf32>
    %79 = arith.maximumf %77, %78 : vector<4x2048xf32>
    %c0_24 = arith.constant 0 : index
    %c0_25 = arith.constant 0 : index
    %80 = vector.load %arg8[%c0_24, %c0_25] : memref<1x1xf32, #tpu.memory_space<vmem>>, vector<1x1xf32>
    %c0_26 = arith.constant 0 : index
    %c0_27 = arith.constant 0 : index
    %81 = vector.load %arg7[%c0_26, %c0_27] : memref<4x1xf32, #tpu.memory_space<vmem>>, vector<4x1xf32>
    %82 = vector.broadcast %81 : vector<4x1xf32> to vector<4x2048xf32>
    %83 = arith.mulf %79, %82 : vector<4x2048xf32>
    %cst_28 = arith.constant dense<0.000000e+00> : vector<2048xf32>
    %84 = vector.multi_reduction <add>, %83, %cst_28 [0] : vector<4x2048xf32> to vector<2048xf32>
    %85 = vector.shape_cast %84 : vector<2048xf32> to vector<1x2048xf32>
    %86 = vector.broadcast %80 : vector<1x1xf32> to vector<1x2048xf32>
    %87 = arith.addf %86, %85 : vector<1x2048xf32>
    %cst_29 = arith.constant 0.000000e+00 : f32
    %88 = vector.broadcast %cst_29 : f32 to vector<1x2048xf32>
    %89 = arith.subf %88, %87 : vector<1x2048xf32>
    %90 = math.exp %89 : vector<1x2048xf32>
    %cst_30 = arith.constant 1.000000e+00 : f32
    %91 = vector.broadcast %cst_30 : f32 to vector<1x2048xf32>
    %92 = arith.addf %91, %90 : vector<1x2048xf32>
    %cst_31 = arith.constant 1.000000e+00 : f32
    %93 = vector.broadcast %cst_31 : f32 to vector<1x2048xf32>
    %94 = arith.divf %93, %92 : vector<1x2048xf32>
    %95 = vector.broadcast %94 : vector<1x2048xf32> to vector<4x2048xf32>
    %96 = arith.mulf %3, %95 : vector<4x2048xf32>
    %c0_32 = arith.constant 0 : index
    %c0_33 = arith.constant 0 : index
    %c0_34 = arith.constant 0 : index
    %97 = vector.load %arg9[%c0_32, %c0_33, %c0_34] : memref<1x4x2048xf32, #tpu.memory_space<vmem>>, vector<1x4x2048xf32>
    %98 = vector.shape_cast %97 : vector<1x4x2048xf32> to vector<4x2048xf32>
    %99 = vector.shape_cast %96 : vector<4x2048xf32> to vector<1x4x2048xf32>
    tpu.vector_store %arg9[%c0_32, %c0_33, %c0_34], %99 {strides = array<i32>} : memref<1x4x2048xf32, #tpu.memory_space<vmem>>, vector<1x4x2048xf32>,
    return
  }
  func.func @transform_0(%arg0: i32, %arg1: i32) -> (i32, i32, i32) {
    %c0_i32 = arith.constant 0 : i32
    %c0_i32_0 = arith.constant 0 : i32
    return %arg0, %c0_i32, %arg1 : i32, i32, i32
  }
  func.func @transform_1(%arg0: i32, %arg1: i32) -> (i32, i32, i32) {
    %c0_i32 = arith.constant 0 : i32
    %c0_i32_0 = arith.constant 0 : i32
    return %arg0, %c0_i32, %arg1 : i32, i32, i32
  }
  func.func @transform_2(%arg0: i32, %arg1: i32) -> (i32, i32) {
    %c0_i32 = arith.constant 0 : i32
    %c0_i32_0 = arith.constant 0 : i32
    %c0_i32_1 = arith.constant 0 : i32
    return %c0_i32, %c0_i32_0 : i32, i32
  }
  func.func @transform_3(%arg0: i32, %arg1: i32) -> (i32, i32) {
    %c0_i32 = arith.constant 0 : i32
    %c0_i32_0 = arith.constant 0 : i32
    %c0_i32_1 = arith.constant 0 : i32
    return %c0_i32, %c0_i32_0 : i32, i32
  }
  func.func @transform_4(%arg0: i32, %arg1: i32) -> (i32, i32) {
    %c0_i32 = arith.constant 0 : i32
    %c0_i32_0 = arith.constant 0 : i32
    %c0_i32_1 = arith.constant 0 : i32
    return %c0_i32, %c0_i32_0 : i32, i32
  }
  func.func @transform_5(%arg0: i32, %arg1: i32) -> (i32, i32) {
    %c0_i32 = arith.constant 0 : i32
    %c0_i32_0 = arith.constant 0 : i32
    %c0_i32_1 = arith.constant 0 : i32
    return %c0_i32, %c0_i32_0 : i32, i32
  }
  func.func @transform_6(%arg0: i32, %arg1: i32) -> (i32, i32) {
    %c0_i32 = arith.constant 0 : i32
    %c0_i32_0 = arith.constant 0 : i32
    %c0_i32_1 = arith.constant 0 : i32
    return %c0_i32, %c0_i32_0 : i32, i32
  }
  func.func @transform_7(%arg0: i32, %arg1: i32) -> (i32, i32, i32) {
    %c0_i32 = arith.constant 0 : i32
    %c0_i32_0 = arith.constant 0 : i32
    return %arg0, %c0_i32, %arg1 : i32, i32, i32
  }
}

</mosaic_0001>

<llo_original>
// kernel: tpu_custom_call.1
$region0: #{tpu_custom_call.1}
  #allocation0 [shape = 'u32[]', space=smem, size = 0x4, offset = 0x4, fixed_abs, tag = 'smem constant byte address 0x4 - core index']
  #allocation1 [shape = 'u32[72,128]{1,0:T(1,128)}', space=vmem, size = 0x9000, scoped, tag = 'internal scratch']
  #allocation2 [shape = 'f32[1,1]{1,0:T(1,128)S(1)}', space=vmem, size = 0x200, scoped, tag = 'scoped memory for tpu_custom_call.1']
  %s0 = inlined_call_operand.hbm [shape: f32[2,8,4096], index: 0, kind: input, shape index: {}]
  %s1 = inlined_call_operand.hbm [shape: f32[2,4,4096], index: 1, kind: input, shape index: {}]
  %s2 = inlined_call_operand.vmem [shape: f32[4,8], index: 2, kind: input, shape index: {}]
  %s3 = inlined_call_operand.vmem [shape: f32[4,4], index: 3, kind: input, shape index: {}]
  %s4 = inlined_call_operand.vmem [shape: f32[4,1], index: 4, kind: input, shape index: {}]
  %s5 = inlined_call_operand.vmem [shape: f32[4,1], index: 5, kind: input, shape index: {}]
  %s6 = inlined_call_operand.<no memory space> [shape: f32[1,1], index: 6, kind: input, shape index: {}]
  %s7 = inlined_call_operand.hbm [shape: f32[2,4,4096], index: 7, kind: output, shape index: {}]
  %s8 = sld [smem:[#allocation0]]
  $region69: #{tpu_custom_call.1} parent=0
    _
  %s10 = ssub.s32 1, %s8
  %s11 = scalar_select 0, %s10, %s8
  %v12 = vstv %s6
  %13 = vst [vmem:[#allocation2] sm:$0x1] %v12
  $region1: #{tpu_custom_call.1} parent=0
    #allocation3 [shape = 'u8[131072]{0}', space=vmem, size = 0x20000, scoped, tag = 'input window, operand 0']
    #allocation4 [shape = 's32[2]{0}', space=sflag, size = 0x8, scoped, tag = 'scoped memory for tpu_custom_call.1']
    #allocation5 [shape = 's32[2]{0}', space=sflag, size = 0x8, scoped, tag = 'scoped memory for tpu_custom_call.1']
    #allocation6 [shape = 'u8[65536]{0}', space=vmem, size = 0x10000, scoped, tag = 'input window, operand 1']
    #allocation7 [shape = 's32[2]{0}', space=sflag, size = 0x8, scoped, tag = 'scoped memory for tpu_custom_call.1']
    #allocation8 [shape = 'u8[65536]{0}', space=vmem, size = 0x10000, scoped, tag = 'output window, operand 0']
    %14 = vsyncpa [#allocation4], 0
    %s15 = scalar_lea.sflag [#allocation4], 1
    %16 = vsyncpa %s15, 0
    %17 = vsyncpa [#allocation7], 0
    %s18 = scalar_lea.sflag [#allocation7], 1
    %19 = vsyncpa %s18, 0
    %20 = vsyncpa [#allocation5], 0
    %s21 = scalar_lea.sflag [#allocation5], 1
    %22 = vsyncpa %s21, 0
    loop: start=0, step=1, limit=6
    $region2: #{tpu_custom_call.1} parent=1 // loop_pre_header
      _
    $region3: #{tpu_custom_call.1} parent=1 // loop_header
      %s24 = sphi 0, %s28
      %p25 = scmp.ge.s32.totalorder %s24, 6
      %s31 = sphi 0, %s43
      %s32 = sphi 0, %s39
      %s33 = sphi 0, %s31
      %s34 = sphi 0, %s32
      %s35 = sphi 0, %s33
      %s36 = sphi 0, %s34
      %s48 = sphi 0, %s50
      %s51 = sphi 0, %s48
      %s52 = sphi 0, %s51
      %s68 = sphi 0, %s52
      %s76 = sphi 0, %s78
      %s79 = sphi 0, %s76
      %s80 = sphi 0, %s79
      %s96 = sphi 0, %s80
      %s100 = sphi 0, %s100
      %s102 = sphi 0, %s100
      %s103 = sphi 0, %s102
      %s117 = sphi 0, %s103
      %s121 = sphi 0, %s121
      %s123 = sphi 0, %s121
      %s124 = sphi 0, %s123
      %s138 = sphi 0, %s124
      %s142 = sphi 0, %s142
      %s144 = sphi 0, %s142
      %s145 = sphi 0, %s144
      %s159 = sphi 0, %s145
      %s163 = sphi 0, %s163
      %s165 = sphi 0, %s163
      %s166 = sphi 0, %s165
      %s180 = sphi 0, %s166
      %s184 = sphi 0, %s184
      %s186 = sphi 0, %s184
      %s187 = sphi 0, %s186
      %s201 = sphi 0, %s187
      %s209 = sphi 0, %s211
      %s212 = sphi 0, %s209
      %s213 = sphi 0, %s212
      %s229 = sphi 0, %s213
    $region4: #{tpu_custom_call.1} parent=1 // loop_header_branch
      %27 = sbr.rel (%p25) target = $region8
    $region5: #{tpu_custom_call.1} parent=1 // loop_body
      %s29 = ssub.s32 %s24, 1
      %s30 = ssub.s32 %s24, 2
      %s37 = sadd.s32 1, %s32
      %p38 = scmp.ge.s32.totalorder %s37, 2
      %s39 = scalar_select %p38, 0, %s37
      %s40 = sadd.s32 1, %s31
      %s41 = scalar_select %p38, %s40, %s31
      %p42 = scmp.ge.s32.totalorder %s41, 2
      %s43 = scalar_select %p42, 0, %s41
      %s44 = ssub.s32 %s31, %s43
      %s45 = ssub.s32 %s32, %s39
      %s46 = sor.u32 %s44, %s45
      %p47 = scmp.eq.s32.totalorder %s46, 0
      %s49 = sadd.s32 %s48, 1
      %s50 = scalar_select %p47, %s48, %s49
      %p53 = pneg %p47
      %p54 = scmp.eq.s32.totalorder %s24, 3
      %p55 = por %p53, %p54
      %p56 = scmp.ne.s32.totalorder %s48, %s51
      %p57 = scmp.eq.s32.totalorder %s24, 0
      %p58 = por %p56, %p57
      %p59 = scmp.ne.s32.totalorder %s48, %s51
      %p60 = scmp.eq.s32.totalorder %s29, 3
      %p61 = por %p59, %p60
      %p62 = scmp.ne.s32.totalorder %s51, %s52
      %p63 = scmp.eq.s32.totalorder %s29, 0
      %p64 = por %p62, %p63
      %p65 = scmp.ne.s32.totalorder %s51, %s52
      %p66 = scmp.eq.s32.totalorder %s30, 3
      %p67 = por %p65, %p66
      %p69 = scmp.ne.s32.totalorder %s52, %s68
      %p70 = scmp.eq.s32.totalorder %s30, 0
      %p71 = por %p69, %p70
      %s72 = ssub.s32 %s31, %s43
      %s73 = ssub.s32 %s32, %s39
      %s74 = sor.u32 %s72, %s73
      %p75 = scmp.eq.s32.totalorder %s74, 0
      %s77 = sadd.s32 %s76, 1
      %s78 = scalar_select %p75, %s76, %s77
      %p81 = pneg %p75
      %p82 = scmp.eq.s32.totalorder %s24, 3
      %p83 = por %p81, %p82
      %p84 = scmp.ne.s32.totalorder %s76, %s79
      %p85 = scmp.eq.s32.totalorder %s24, 0
      %p86 = por %p84, %p85
      %p87 = scmp.ne.s32.totalorder %s76, %s79
      %p88 = scmp.eq.s32.totalorder %s29, 3
      %p89 = por %p87, %p88
      %p90 = scmp.ne.s32.totalorder %s79, %s80
      %p91 = scmp.eq.s32.totalorder %s29, 0
      %p92 = por %p90, %p91
      %p93 = scmp.ne.s32.totalorder %s79, %s80
      %p94 = scmp.eq.s32.totalorder %s30, 3
      %p95 = por %p93, %p94
      %p97 = scmp.ne.s32.totalorder %s80, %s96
      %p98 = scmp.eq.s32.totalorder %s30, 0
      %p99 = por %p97, %p98
      %s101 = sadd.s32 %s100, 1
      %p104 = scmp.eq.s32.totalorder %s24, 3
      %p105 = scmp.ne.s32.totalorder %s100, %s102
      %p106 = scmp.eq.s32.totalorder %s24, 0
      %p107 = por %p105, %p106
      %p108 = scmp.ne.s32.totalorder %s100, %s102
      %p109 = scmp.eq.s32.totalorder %s29, 3
      %p110 = por %p108, %p109
      %p111 = scmp.ne.s32.totalorder %s102, %s103
      %p112 = scmp.eq.s32.totalorder %s29, 0
      %p113 = por %p111, %p112
      %p114 = scmp.ne.s32.totalorder %s102, %s103
      %p115 = scmp.eq.s32.totalorder %s30, 3
      %p116 = por %p114, %p115
      %p118 = scmp.ne.s32.totalorder %s103, %s117
      %p119 = scmp.eq.s32.totalorder %s30, 0
      %p120 = por %p118, %p119
      %s122 = sadd.s32 %s121, 1
      %p125 = scmp.eq.s32.totalorder %s24, 3
      %p126 = scmp.ne.s32.totalorder %s121, %s123
      %p127 = scmp.eq.s32.totalorder %s24, 0
      %p128 = por %p126, %p127
      %p129 = scmp.ne.s32.totalorder %s121, %s123
      %p130 = scmp.eq.s32.totalorder %s29, 3
      %p131 = por %p129, %p130
      %p132 = scmp.ne.s32.totalorder %s123, %s124
      %p133 = scmp.eq.s32.totalorder %s29, 0
      %p134 = por %p132, %p133
      %p135 = scmp.ne.s32.totalorder %s123, %s124
      %p136 = scmp.eq.s32.totalorder %s30, 3
      %p137 = por %p135, %p136
      %p139 = scmp.ne.s32.totalorder %s124, %s138
      %p140 = scmp.eq.s32.totalorder %s30, 0
      %p141 = por %p139, %p140
      %s143 = sadd.s32 %s142, 1
      %p146 = scmp.eq.s32.totalorder %s24, 3
      %p147 = scmp.ne.s32.totalorder %s142, %s144
      %p148 = scmp.eq.s32.totalorder %s24, 0
      %p149 = por %p147, %p148
      %p150 = scmp.ne.s32.totalorder %s142, %s144
      %p151 = scmp.eq.s32.totalorder %s29, 3
      %p152 = por %p150, %p151
      %p153 = scmp.ne.s32.totalorder %s144, %s145
      %p154 = scmp.eq.s32.totalorder %s29, 0
      %p155 = por %p153, %p154
      %p156 = scmp.ne.s32.totalorder %s144, %s145
      %p157 = scmp.eq.s32.totalorder %s30, 3
      %p158 = por %p156, %p157
      %p160 = scmp.ne.s32.totalorder %s145, %s159
      %p161 = scmp.eq.s32.totalorder %s30, 0
      %p162 = por %p160, %p161
      %s164 = sadd.s32 %s163, 1
      %p167 = scmp.eq.s32.totalorder %s24, 3
      %p168 = scmp.ne.s32.totalorder %s163, %s165
      %p169 = scmp.eq.s32.totalorder %s24, 0
      %p170 = por %p168, %p169
      %p171 = scmp.ne.s32.totalorder %s163, %s165
      %p172 = scmp.eq.s32.totalorder %s29, 3
      %p173 = por %p171, %p172
      %p174 = scmp.ne.s32.totalorder %s165, %s166
      %p175 = scmp.eq.s32.totalorder %s29, 0
      %p176 = por %p174, %p175
      %p177 = scmp.ne.s32.totalorder %s165, %s166
      %p178 = scmp.eq.s32.totalorder %s30, 3
      %p179 = por %p177, %p178
      %p181 = scmp.ne.s32.totalorder %s166, %s180
      %p182 = scmp.eq.s32.totalorder %s30, 0
      %p183 = por %p181, %p182
      %s185 = sadd.s32 %s184, 1
      %p188 = scmp.eq.s32.totalorder %s24, 3
      %p189 = scmp.ne.s32.totalorder %s184, %s186
      %p190 = scmp.eq.s32.totalorder %s24, 0
      %p191 = por %p189, %p190
      %p192 = scmp.ne.s32.totalorder %s184, %s186
      %p193 = scmp.eq.s32.totalorder %s29, 3
      %p194 = por %p192, %p193
      %p195 = scmp.ne.s32.totalorder %s186, %s187
      %p196 = scmp.eq.s32.totalorder %s29, 0
      %p197 = por %p195, %p196
      %p198 = scmp.ne.s32.totalorder %s186, %s187
      %p199 = scmp.eq.s32.totalorder %s30, 3
      %p200 = por %p198, %p199
      %p202 = scmp.ne.s32.totalorder %s187, %s201
      %p203 = scmp.eq.s32.totalorder %s30, 0
      %p204 = por %p202, %p203
      %s205 = ssub.s32 %s31, %s43
      %s206 = ssub.s32 %s32, %s39
      %s207 = sor.u32 %s205, %s206
      %p208 = scmp.eq.s32.totalorder %s207, 0
      %s210 = sadd.s32 %s209, 1
      %s211 = scalar_select %p208, %s209, %s210
      %p214 = pneg %p208
      %p215 = scmp.eq.s32.totalorder %s24, 3
      %p216 = por %p214, %p215
      %p217 = scmp.ne.s32.totalorder %s209, %s212
      %p218 = scmp.eq.s32.totalorder %s24, 0
      %p219 = por %p217, %p218
      %p220 = scmp.ne.s32.totalorder %s209, %s212
      %p221 = scmp.eq.s32.totalorder %s29, 3
      %p222 = por %p220, %p221
      %p223 = scmp.ne.s32.totalorder %s212, %s213
      %p224 = scmp.eq.s32.totalorder %s29, 0
      %p225 = por %p223, %p224
      %p226 = scmp.ne.s32.totalorder %s212, %s213
      %p227 = scmp.eq.s32.totalorder %s30, 3
      %p228 = por %p226, %p227
      %p230 = scmp.ne.s32.totalorder %s213, %s229
      %p231 = scmp.eq.s32.totalorder %s30, 0
      %p232 = por %p230, %p231
      %p233 = scmp.le.s32.totalorder 1, %s24
      %p234 = scmp.lt.s32.totalorder %s24, 5
      %p235 = pnand %p233, %p234
      %p236 = pneg %p235
      // Predicated region
      $region9: #{tpu_custom_call.1} parent=5 // pred_check
        _
      $region10: #{tpu_custom_call.1} parent=5 // pred_check_branch
        %238 = sbr.rel (%p235) target = $region12
      $region11: #{tpu_custom_call.1} parent=5 // pred_region
        %s239 = ssub.s32 %s24, 1
        // Predicated region
        $region13: #{tpu_custom_call.1} parent=11 // pred_check
          %p240 = pneg %p113
        $region14: #{tpu_custom_call.1} parent=11 // pred_check_branch
          %242 = sbr.rel (%p240) target = $region16
        $region15: #{tpu_custom_call.1} parent=11 // pred_region
          _
        $region16: #{tpu_custom_call.1} parent=11 // pred_fallthru
          _
        // Predicated region
        $region17: #{tpu_custom_call.1} parent=11 // pred_check
          %p243 = pneg %p134
        $region18: #{tpu_custom_call.1} parent=11 // pred_check_branch
          %245 = sbr.rel (%p243) target = $region20
        $region19: #{tpu_custom_call.1} parent=11 // pred_region
          _
        $region20: #{tpu_custom_call.1} parent=11 // pred_fallthru
          _
        // Predicated region
        $region21: #{tpu_custom_call.1} parent=11 // pred_check
          %p246 = pneg %p155
        $region22: #{tpu_custom_call.1} parent=11 // pred_check_branch
          %248 = sbr.rel (%p246) target = $region24
        $region23: #{tpu_custom_call.1} parent=11 // pred_region
          _
        $region24: #{tpu_custom_call.1} parent=11 // pred_fallthru
          _
        // Predicated region
        $region25: #{tpu_custom_call.1} parent=11 // pred_check
          %p249 = pneg %p176
        $region26: #{tpu_custom_call.1} parent=11 // pred_check_branch
          %251 = sbr.rel (%p249) target = $region28
        $region27: #{tpu_custom_call.1} parent=11 // pred_region
          _
        $region28: #{tpu_custom_call.1} parent=11 // pred_fallthru
          _
        // Predicated region
        $region29: #{tpu_custom_call.1} parent=11 // pred_check
          %p252 = pneg %p197
        $region30: #{tpu_custom_call.1} parent=11 // pred_check_branch
          %254 = sbr.rel (%p252) target = $region32
        $region31: #{tpu_custom_call.1} parent=11 // pred_region
          _
        $region32: #{tpu_custom_call.1} parent=11 // pred_fallthru
          _
      $region12: #{tpu_custom_call.1} parent=5 // pred_fallthru
        _
      %p255 = scmp.lt.s32.totalorder %s24, 4
      // Predicated region
      $region33: #{tpu_custom_call.1} parent=5 // pred_check
        %p256 = pneg %p255
      $region34: #{tpu_custom_call.1} parent=5 // pred_check_branch
        %258 = sbr.rel (%p256) target = $region36
      $region35: #{tpu_custom_call.1} parent=5 // pred_region
        // Predicated region
        $region37: #{tpu_custom_call.1} parent=35 // pred_check
          %p259 = pneg %p58
        $region38: #{tpu_custom_call.1} parent=35 // pred_check_branch
          %261 = sbr.rel (%p259) target = $region40
        $region39: #{tpu_custom_call.1} parent=35 // pred_region
          %s262 = sand.u32 %s48, 1
          %s263 = scalar_lea.sflag [#allocation4], %s262
          %s264 = sand.u32 %s48, 1
          %s265 = smul.addr %s264, 128
          %s266 = scalar_lea.vmem [#allocation3], %s265
          %s267 = smul.u32 16, %s32
          %269 = vsyncadd %s263, 0
          %s270 = smul.addr %s31, 32
          %s271 = sadd.s32 %s267, %s270
          %s272 = smul.addr %s271, 8
          %s273 = scalar_lea.hbm %s0, %s272
          %s275 = sshll.u32 %s273, 4
          %s276 = int_to_ptr.hbm [resolvable:$true] %s275
          %s277 = sshll.u32 %s266, 4
          %s278 = int_to_ptr.vmem [resolvable:$true] %s277
          %280 = dma.hbm_to_vmem [thread:$0]  %s276, 2048, %s278, %s263
        $region40: #{tpu_custom_call.1} parent=35 // pred_fallthru
          _
        // Predicated region
        $region41: #{tpu_custom_call.1} parent=35 // pred_check
          %p281 = pneg %p86
        $region42: #{tpu_custom_call.1} parent=35 // pred_check_branch
          %283 = sbr.rel (%p281) target = $region44
        $region43: #{tpu_custom_call.1} parent=35 // pred_region
          %s284 = sand.u32 %s76, 1
          %s285 = scalar_lea.sflag [#allocation7], %s284
          %s286 = sand.u32 %s76, 1
          %s287 = smul.addr %s286, 64
          %s288 = scalar_lea.vmem [#allocation6], %s287
          %s289 = smul.u32 16, %s32
          %291 = vsyncadd %s285, 0
          %s292 = smul.addr %s31, 32
          %s293 = sadd.s32 %s289, %s292
          %s294 = smul.addr %s293, 4
          %s295 = scalar_lea.hbm %s1, %s294
          %s297 = sshll.u32 %s295, 4
          %s298 = int_to_ptr.hbm [resolvable:$true] %s297
          %s299 = sshll.u32 %s288, 4
          %s300 = int_to_ptr.vmem [resolvable:$true] %s299
          %302 = dma.hbm_to_vmem [thread:$0]  %s298, 1024, %s300, %s285
        $region44: #{tpu_custom_call.1} parent=35 // pred_fallthru
          _
      $region36: #{tpu_custom_call.1} parent=5 // pred_fallthru
        _
      %p303 = scmp.le.s32.totalorder 1, %s24
      %p304 = scmp.lt.s32.totalorder %s24, 5
      %p305 = pnand %p303, %p304
      %p306 = pneg %p305
      // Predicated region
      $region45: #{tpu_custom_call.1} parent=5 // pred_check
        _
      $region46: #{tpu_custom_call.1} parent=5 // pred_check_branch
        %308 = sbr.rel (%p305) target = $region48
      $region47: #{tpu_custom_call.1} parent=5 // pred_region
        %s309 = ssub.s32 %s24, 1
        %s310 = sand.u32 %s51, 1
        %s311 = scalar_lea.sflag [#allocation4], %s310
        %s312 = sand.u32 %s51, 1
        %s313 = smul.addr %s312, 128
        %s314 = scalar_lea.vmem [#allocation3], %s313
        // Predicated region
        $region49: #{tpu_custom_call.1} parent=47 // pred_check
          %p315 = pneg %p64
        $region50: #{tpu_custom_call.1} parent=47 // pred_check_branch
          %317 = sbr.rel (%p315) target = $region52
        $region51: #{tpu_custom_call.1} parent=47 // pred_region
          %319 = dma.done %s311, 2048
        $region52: #{tpu_custom_call.1} parent=47 // pred_fallthru
          _
        %s320 = sand.u32 %s79, 1
        %s321 = scalar_lea.sflag [#allocation7], %s320
        %s322 = sand.u32 %s79, 1
        %s323 = smul.addr %s322, 64
        %s324 = scalar_lea.vmem [#allocation6], %s323
        // Predicated region
        $region53: #{tpu_custom_call.1} parent=47 // pred_check
          %p325 = pneg %p92
        $region54: #{tpu_custom_call.1} parent=47 // pred_check_branch
          %327 = sbr.rel (%p325) target = $region56
        $region55: #{tpu_custom_call.1} parent=47 // pred_region
          %329 = dma.done %s321, 1024
        $region56: #{tpu_custom_call.1} parent=47 // pred_fallthru
          _
        %s330 = sand.u32 %s51, 1
        %s331 = scalar_lea.sflag [#allocation4], %s330
        %s332 = sand.u32 %s51, 1
        %s333 = smul.addr %s332, 128
        %s334 = scalar_lea.vmem [#allocation3], %s333
        %p335 = pneg %p64
        %p336 = pneg %p61
        %s337 = sand.u32 %s79, 1
        %s338 = scalar_lea.sflag [#allocation7], %s337
        %s339 = sand.u32 %s79, 1
        %s340 = smul.addr %s339, 64
        %s341 = scalar_lea.vmem [#allocation6], %s340
        %p342 = pneg %p92
        %p343 = pneg %p89
        %p344 = pneg %p113
        %p345 = pneg %p110
        %p346 = pneg %p134
        %p347 = pneg %p131
        %p348 = pneg %p155
        %p349 = pneg %p152
        %p350 = pneg %p176
        %p351 = pneg %p173
        %p352 = pneg %p197
        %p353 = pneg %p194
        %p354 = pneg %p225
        %p355 = pneg %p222
        %s356 = sand.u32 %s212, 1
        %s357 = scalar_lea.sflag [#allocation5], %s356
        %s358 = sand.u32 %s212, 1
        %s359 = smul.addr %s358, 64
        %s360 = scalar_lea.vmem [#allocation8], %s359
        %s361 = smul.u32 16, %s34
        %s362 = smul.u32 16, %s34
        %s363 = smul.u32 16, %s34
        %v364 = vld [vmem:[%s314] sm:$0xff]
        %v365 = vld [vmem:[%s314 + $0x8] sm:$0xff]
        %v366 = vld [vmem:[%s314 + $0x10] sm:$0xff]
        %v367 = vld [vmem:[%s314 + $0x18] sm:$0xff]
        %v368 = vld [vmem:[%s314 + $0x20] sm:$0xff]
        %v369 = vld [vmem:[%s314 + $0x28] sm:$0xff]
        %v370 = vld [vmem:[%s314 + $0x30] sm:$0xff]
        %v371 = vld [vmem:[%s314 + $0x38] sm:$0xff]
        %v372 = vld [vmem:[%s314 + $0x40] sm:$0xff]
        %v373 = vld [vmem:[%s314 + $0x48] sm:$0xff]
        %v374 = vld [vmem:[%s314 + $0x50] sm:$0xff]
        %v375 = vld [vmem:[%s314 + $0x58] sm:$0xff]
        %v376 = vld [vmem:[%s314 + $0x60] sm:$0xff]
        %v377 = vld [vmem:[%s314 + $0x68] sm:$0xff]
        %v378 = vld [vmem:[%s314 + $0x70] sm:$0xff]
        %v379 = vld [vmem:[%s314 + $0x78] sm:$0xff]
        %v380 = vld [vmem:[%s324] sm:$0xff]
        %v381 = vld [vmem:[%s324 + $0x8] sm:$0xff]
        %v382 = vld [vmem:[%s324 + $0x10] sm:$0xff]
        %v383 = vld [vmem:[%s324 + $0x18] sm:$0xff]
        %v384 = vld [vmem:[%s324 + $0x20] sm:$0xff]
        %v385 = vld [vmem:[%s324 + $0x28] sm:$0xff]
        %v386 = vld [vmem:[%s324 + $0x30] sm:$0xff]
        %v387 = vld [vmem:[%s324 + $0x38] sm:$0xff]
        %v388 = vld [vmem:[%s4] sm:$0xf]
        %v389 = vld [vmem:[%s2] sm:$0xf]
        %391 = vset.pattern.permute.xlu0 0
        %392 = vperm.xlu0 %391, %v389
        %v393 = vpop.permute.xlu0 %392
        %v395 = vperm.slane %v364, 0
        %v396 = vperm.slane %v365, 0
        %v397 = vperm.slane %v366, 0
        %v398 = vperm.slane %v367, 0
        %v399 = vperm.slane %v368, 0
        %v400 = vperm.slane %v369, 0
        %v401 = vperm.slane %v370, 0
        %v402 = vperm.slane %v371, 0
        %v403 = vperm.slane %v372, 0
        %v404 = vperm.slane %v373, 0
        %v405 = vperm.slane %v374, 0
        %v406 = vperm.slane %v375, 0
        %v407 = vperm.slane %v376, 0
        %v408 = vperm.slane %v377, 0
        %v409 = vperm.slane %v378, 0
        %v410 = vperm.slane %v379, 0
        %v411 = vmul.f32 %v393, %v395
        %v412 = vmul.f32 %v393, %v396
        %v413 = vmul.f32 %v393, %v397
        %v414 = vmul.f32 %v393, %v398
        %v415 = vmul.f32 %v393, %v399
        %v416 = vmul.f32 %v393, %v400
        %v417 = vmul.f32 %v393, %v401
        %v418 = vmul.f32 %v393, %v402
        %v419 = vmul.f32 %v393, %v403
        %v420 = vmul.f32 %v393, %v404
        %v421 = vmul.f32 %v393, %v405
        %v422 = vmul.f32 %v393, %v406
        %v423 = vmul.f32 %v393, %v407
        %v424 = vmul.f32 %v393, %v408
        %v425 = vmul.f32 %v393, %v409
        %v426 = vmul.f32 %v393, %v410
        %428 = vset.pattern.permute.xlu0 0
        %429 = vperm.xlu0 %428, %v388
        %v430 = vpop.permute.xlu0 %429
        %v432 = vadd.f32 %v430, %v411
        %v433 = vadd.f32 %v430, %v412
        %v434 = vadd.f32 %v430, %v413
        %v435 = vadd.f32 %v430, %v414
        %v436 = vadd.f32 %v430, %v415
        %v437 = vadd.f32 %v430, %v416
        %v438 = vadd.f32 %v430, %v417
        %v439 = vadd.f32 %v430, %v418
        %v440 = vadd.f32 %v430, %v419
        %v441 = vadd.f32 %v430, %v420
        %v442 = vadd.f32 %v430, %v421
        %v443 = vadd.f32 %v430, %v422
        %v444 = vadd.f32 %v430, %v423
        %v445 = vadd.f32 %v430, %v424
        %v446 = vadd.f32 %v430, %v425
        %v447 = vadd.f32 %v430, %v426
        %448 = vset.pattern.permute.xlu0 1
        %449 = vperm.xlu0 %448, %v389
        %v450 = vpop.permute.xlu0 %449
        %v452 = vperm.slane %v364, 1
        %v453 = vperm.slane %v365, 1
        %v454 = vperm.slane %v366, 1
        %v455 = vperm.slane %v367, 1
        %v456 = vperm.slane %v368, 1
        %v457 = vperm.slane %v369, 1
        %v458 = vperm.slane %v370, 1
        %v459 = vperm.slane %v371, 1
        %v460 = vperm.slane %v372, 1
        %v461 = vperm.slane %v373, 1
        %v462 = vperm.slane %v374, 1
        %v463 = vperm.slane %v375, 1
        %v464 = vperm.slane %v376, 1
        %v465 = vperm.slane %v377, 1
        %v466 = vperm.slane %v378, 1
        %v467 = vperm.slane %v379, 1
        %v468 = vmul.f32 %v450, %v452
        %v469 = vmul.f32 %v450, %v453
        %v470 = vmul.f32 %v450, %v454
        %v471 = vmul.f32 %v450, %v455
        %v472 = vmul.f32 %v450, %v456
        %v473 = vmul.f32 %v450, %v457
        %v474 = vmul.f32 %v450, %v458
        %v475 = vmul.f32 %v450, %v459
        %v476 = vmul.f32 %v450, %v460
        %v477 = vmul.f32 %v450, %v461
        %v478 = vmul.f32 %v450, %v462
        %v479 = vmul.f32 %v450, %v463
        %v480 = vmul.f32 %v450, %v464
        %v481 = vmul.f32 %v450, %v465
        %v482 = vmul.f32 %v450, %v466
        %v483 = vmul.f32 %v450, %v467
        %v484 = vadd.f32 %v432, %v468
        %v485 = vadd.f32 %v433, %v469
        %v486 = vadd.f32 %v434, %v470
        %v487 = vadd.f32 %v435, %v471
        %v488 = vadd.f32 %v436, %v472
        %v489 = vadd.f32 %v437, %v473
        %v490 = vadd.f32 %v438, %v474
        %v491 = vadd.f32 %v439, %v475
        %v492 = vadd.f32 %v440, %v476
        %v493 = vadd.f32 %v441, %v477
        %v494 = vadd.f32 %v442, %v478
        %v495 = vadd.f32 %v443, %v479
        %v496 = vadd.f32 %v444, %v480
        %v497 = vadd.f32 %v445, %v481
        %v498 = vadd.f32 %v446, %v482
        %v499 = vadd.f32 %v447, %v483
        %500 = vset.pattern.permute.xlu0 2
        %501 = vperm.xlu0 %500, %v389
        %v502 = vpop.permute.xlu0 %501
        %v504 = vperm.slane %v364, 2
        %v505 = vperm.slane %v365, 2
        %v506 = vperm.slane %v366, 2
        %v507 = vperm.slane %v367, 2
        %v508 = vperm.slane %v368, 2
        %v509 = vperm.slane %v369, 2
        %v510 = vperm.slane %v370, 2
        %v511 = vperm.slane %v371, 2
        %v512 = vperm.slane %v372, 2
        %v513 = vperm.slane %v373, 2
        %v514 = vperm.slane %v374, 2
        %v515 = vperm.slane %v375, 2
        %v516 = vperm.slane %v376, 2
        %v517 = vperm.slane %v377, 2
        %v518 = vperm.slane %v378, 2
        %v519 = vperm.slane %v379, 2
        %v520 = vmul.f32 %v502, %v504
        %v521 = vmul.f32 %v502, %v505
        %v522 = vmul.f32 %v502, %v506
        %v523 = vmul.f32 %v502, %v507
        %v524 = vmul.f32 %v502, %v508
        %v525 = vmul.f32 %v502, %v509
        %v526 = vmul.f32 %v502, %v510
        %v527 = vmul.f32 %v502, %v511
        %v528 = vmul.f32 %v502, %v512
        %v529 = vmul.f32 %v502, %v513
        %v530 = vmul.f32 %v502, %v514
        %v531 = vmul.f32 %v502, %v515
        %v532 = vmul.f32 %v502, %v516
        %v533 = vmul.f32 %v502, %v517
        %v534 = vmul.f32 %v502, %v518
        %v535 = vmul.f32 %v502, %v519
        %v536 = vadd.f32 %v484, %v520
        %v537 = vadd.f32 %v485, %v521
        %v538 = vadd.f32 %v486, %v522
        %v539 = vadd.f32 %v487, %v523
        %v540 = vadd.f32 %v488, %v524
        %v541 = vadd.f32 %v489, %v525
        %v542 = vadd.f32 %v490, %v526
        %v543 = vadd.f32 %v491, %v527
        %v544 = vadd.f32 %v492, %v528
        %v545 = vadd.f32 %v493, %v529
        %v546 = vadd.f32 %v494, %v530
        %v547 = vadd.f32 %v495, %v531
        %v548 = vadd.f32 %v496, %v532
        %v549 = vadd.f32 %v497, %v533
        %v550 = vadd.f32 %v498, %v534
        %v551 = vadd.f32 %v499, %v535
        %552 = vset.pattern.permute.xlu0 3
        %553 = vperm.xlu0 %552, %v389
        %v554 = vpop.permute.xlu0 %553
        %v556 = vperm.slane %v364, 3
        %v557 = vperm.slane %v365, 3
        %v558 = vperm.slane %v366, 3
        %v559 = vperm.slane %v367, 3
        %v560 = vperm.slane %v368, 3
        %v561 = vperm.slane %v369, 3
        %v562 = vperm.slane %v370, 3
        %v563 = vperm.slane %v371, 3
        %v564 = vperm.slane %v372, 3
        %v565 = vperm.slane %v373, 3
        %v566 = vperm.slane %v374, 3
        %v567 = vperm.slane %v375, 3
        %v568 = vperm.slane %v376, 3
        %v569 = vperm.slane %v377, 3
        %v570 = vperm.slane %v378, 3
        %v571 = vperm.slane %v379, 3
        %v572 = vmul.f32 %v554, %v556
        %v573 = vmul.f32 %v554, %v557
        %v574 = vmul.f32 %v554, %v558
        %v575 = vmul.f32 %v554, %v559
        %v576 = vmul.f32 %v554, %v560
        %v577 = vmul.f32 %v554, %v561
        %v578 = vmul.f32 %v554, %v562
        %v579 = vmul.f32 %v554, %v563
        %v580 = vmul.f32 %v554, %v564
        %v581 = vmul.f32 %v554, %v565
        %v582 = vmul.f32 %v554, %v566
        %v583 = vmul.f32 %v554, %v567
        %v584 = vmul.f32 %v554, %v568
        %v585 = vmul.f32 %v554, %v569
        %v586 = vmul.f32 %v554, %v570
        %v587 = vmul.f32 %v554, %v571
        %v588 = vadd.f32 %v536, %v572
        %v589 = vadd.f32 %v537, %v573
        %v590 = vadd.f32 %v538, %v574
        %v591 = vadd.f32 %v539, %v575
        %v592 = vadd.f32 %v540, %v576
        %v593 = vadd.f32 %v541, %v577
        %v594 = vadd.f32 %v542, %v578
        %v595 = vadd.f32 %v543, %v579
        %v596 = vadd.f32 %v544, %v580
        %v597 = vadd.f32 %v545, %v581
        %v598 = vadd.f32 %v546, %v582
        %v599 = vadd.f32 %v547, %v583
        %v600 = vadd.f32 %v548, %v584
        %v601 = vadd.f32 %v549, %v585
        %v602 = vadd.f32 %v550, %v586
        %v603 = vadd.f32 %v551, %v587
        %604 = vset.pattern.permute.xlu0 4
        %605 = vperm.xlu0 %604, %v389
        %v606 = vpop.permute.xlu0 %605
        %v608 = vperm.slane %v364, 4
        %v609 = vperm.slane %v365, 4
        %v610 = vperm.slane %v366, 4
        %v611 = vperm.slane %v367, 4
        %v612 = vperm.slane %v368, 4
        %v613 = vperm.slane %v369, 4
        %v614 = vperm.slane %v370, 4
        %v615 = vperm.slane %v371, 4
        %v616 = vperm.slane %v372, 4
        %v617 = vperm.slane %v373, 4
        %v618 = vperm.slane %v374, 4
        %v619 = vperm.slane %v375, 4
        %v620 = vperm.slane %v376, 4
        %v621 = vperm.slane %v377, 4
        %v622 = vperm.slane %v378, 4
        %v623 = vperm.slane %v379, 4
        %v624 = vmul.f32 %v606, %v608
        %v625 = vmul.f32 %v606, %v609
        %v626 = vmul.f32 %v606, %v610
        %v627 = vmul.f32 %v606, %v611
        %v628 = vmul.f32 %v606, %v612
        %v629 = vmul.f32 %v606, %v613
        %v630 = vmul.f32 %v606, %v614
        %v631 = vmul.f32 %v606, %v615
        %v632 = vmul.f32 %v606, %v616
        %v633 = vmul.f32 %v606, %v617
        %v634 = vmul.f32 %v606, %v618
        %v635 = vmul.f32 %v606, %v619
        %v636 = vmul.f32 %v606, %v620
        %v637 = vmul.f32 %v606, %v621
        %v638 = vmul.f32 %v606, %v622
        %v639 = vmul.f32 %v606, %v623
        %v640 = vadd.f32 %v588, %v624
        %v641 = vadd.f32 %v589, %v625
        %v642 = vadd.f32 %v590, %v626
        %v643 = vadd.f32 %v591, %v627
        %v644 = vadd.f32 %v592, %v628
        %v645 = vadd.f32 %v593, %v629
        %v646 = vadd.f32 %v594, %v630
        %v647 = vadd.f32 %v595, %v631
        %v648 = vadd.f32 %v596, %v632
        %v649 = vadd.f32 %v597, %v633
        %v650 = vadd.f32 %v598, %v634
        %v651 = vadd.f32 %v599, %v635
        %v652 = vadd.f32 %v600, %v636
        %v653 = vadd.f32 %v601, %v637
        %v654 = vadd.f32 %v602, %v638
        %v655 = vadd.f32 %v603, %v639
        %656 = vset.pattern.permute.xlu0 5
        %657 = vperm.xlu0 %656, %v389
        %v658 = vpop.permute.xlu0 %657
        %v660 = vperm.slane %v364, 5
        %v661 = vperm.slane %v365, 5
        %v662 = vperm.slane %v366, 5
        %v663 = vperm.slane %v367, 5
        %v664 = vperm.slane %v368, 5
        %v665 = vperm.slane %v369, 5
        %v666 = vperm.slane %v370, 5
        %v667 = vperm.slane %v371, 5
        %v668 = vperm.slane %v372, 5
        %v669 = vperm.slane %v373, 5
        %v670 = vperm.slane %v374, 5
        %v671 = vperm.slane %v375, 5
        %v672 = vperm.slane %v376, 5
        %v673 = vperm.slane %v377, 5
        %v674 = vperm.slane %v378, 5
        %v675 = vperm.slane %v379, 5
        %v676 = vmul.f32 %v658, %v660
        %v677 = vmul.f32 %v658, %v661
        %v678 = vmul.f32 %v658, %v662
        %v679 = vmul.f32 %v658, %v663
        %v680 = vmul.f32 %v658, %v664
        %v681 = vmul.f32 %v658, %v665
        %v682 = vmul.f32 %v658, %v666
        %v683 = vmul.f32 %v658, %v667
        %v684 = vmul.f32 %v658, %v668
        %v685 = vmul.f32 %v658, %v669
        %v686 = vmul.f32 %v658, %v670
        %v687 = vmul.f32 %v658, %v671
        %v688 = vmul.f32 %v658, %v672
        %v689 = vmul.f32 %v658, %v673
        %v690 = vmul.f32 %v658, %v674
        %v691 = vmul.f32 %v658, %v675
        %v692 = vadd.f32 %v640, %v676
        %v693 = vadd.f32 %v641, %v677
        %v694 = vadd.f32 %v642, %v678
        %v695 = vadd.f32 %v643, %v679
        %v696 = vadd.f32 %v644, %v680
        %v697 = vadd.f32 %v645, %v681
        %v698 = vadd.f32 %v646, %v682
        %v699 = vadd.f32 %v647, %v683
        %v700 = vadd.f32 %v648, %v684
        %v701 = vadd.f32 %v649, %v685
        %v702 = vadd.f32 %v650, %v686
        %v703 = vadd.f32 %v651, %v687
        %v704 = vadd.f32 %v652, %v688
        %v705 = vadd.f32 %v653, %v689
        %v706 = vadd.f32 %v654, %v690
        %v707 = vadd.f32 %v655, %v691
        %708 = vset.pattern.permute.xlu0 6
        %709 = vperm.xlu0 %708, %v389
        %v710 = vpop.permute.xlu0 %709
        %v712 = vperm.slane %v364, 6
        %v713 = vperm.slane %v365, 6
        %v714 = vperm.slane %v366, 6
        %v715 = vperm.slane %v367, 6
        %v716 = vperm.slane %v368, 6
        %v717 = vperm.slane %v369, 6
        %v718 = vperm.slane %v370, 6
        %v719 = vperm.slane %v371, 6
        %v720 = vperm.slane %v372, 6
        %v721 = vperm.slane %v373, 6
        %v722 = vperm.slane %v374, 6
        %v723 = vperm.slane %v375, 6
        %v724 = vperm.slane %v376, 6
        %v725 = vperm.slane %v377, 6
        %v726 = vperm.slane %v378, 6
        %v727 = vperm.slane %v379, 6
        %v728 = vmul.f32 %v710, %v712
        %v729 = vmul.f32 %v710, %v713
        %v730 = vmul.f32 %v710, %v714
        %v731 = vmul.f32 %v710, %v715
        %v732 = vmul.f32 %v710, %v716
        %v733 = vmul.f32 %v710, %v717
        %v734 = vmul.f32 %v710, %v718
        %v735 = vmul.f32 %v710, %v719
        %v736 = vmul.f32 %v710, %v720
        %v737 = vmul.f32 %v710, %v721
        %v738 = vmul.f32 %v710, %v722
        %v739 = vmul.f32 %v710, %v723
        %v740 = vmul.f32 %v710, %v724
        %v741 = vmul.f32 %v710, %v725
        %v742 = vmul.f32 %v710, %v726
        %v743 = vmul.f32 %v710, %v727
        %v744 = vadd.f32 %v692, %v728
        %v745 = vadd.f32 %v693, %v729
        %v746 = vadd.f32 %v694, %v730
        %v747 = vadd.f32 %v695, %v731
        %v748 = vadd.f32 %v696, %v732
        %v749 = vadd.f32 %v697, %v733
        %v750 = vadd.f32 %v698, %v734
        %v751 = vadd.f32 %v699, %v735
        %v752 = vadd.f32 %v700, %v736
        %v753 = vadd.f32 %v701, %v737
        %v754 = vadd.f32 %v702, %v738
        %v755 = vadd.f32 %v703, %v739
        %v756 = vadd.f32 %v704, %v740
        %v757 = vadd.f32 %v705, %v741
        %v758 = vadd.f32 %v706, %v742
        %v759 = vadd.f32 %v707, %v743
        %760 = vset.pattern.permute.xlu0 7
        %761 = vperm.xlu0 %760, %v389
        %v762 = vpop.permute.xlu0 %761
        %v764 = vperm.slane %v364, 7
        %v765 = vperm.slane %v365, 7
        %v766 = vperm.slane %v366, 7
        %v767 = vperm.slane %v367, 7
        %v768 = vperm.slane %v368, 7
        %v769 = vperm.slane %v369, 7
        %v770 = vperm.slane %v370, 7
        %v771 = vperm.slane %v371, 7
        %v772 = vperm.slane %v372, 7
        %v773 = vperm.slane %v373, 7
        %v774 = vperm.slane %v374, 7
        %v775 = vperm.slane %v375, 7
        %v776 = vperm.slane %v376, 7
        %v777 = vperm.slane %v377, 7
        %v778 = vperm.slane %v378, 7
        %v779 = vperm.slane %v379, 7
        %v780 = vmul.f32 %v762, %v764
        %v781 = vmul.f32 %v762, %v765
        %v782 = vmul.f32 %v762, %v766
        %v783 = vmul.f32 %v762, %v767
        %v784 = vmul.f32 %v762, %v768
        %v785 = vmul.f32 %v762, %v769
        %v786 = vmul.f32 %v762, %v770
        %v787 = vmul.f32 %v762, %v771
        %v788 = vmul.f32 %v762, %v772
        %v789 = vmul.f32 %v762, %v773
        %v790 = vmul.f32 %v762, %v774
        %v791 = vmul.f32 %v762, %v775
        %v792 = vmul.f32 %v762, %v776
        %v793 = vmul.f32 %v762, %v777
        %v794 = vmul.f32 %v762, %v778
        %v795 = vmul.f32 %v762, %v779
        %v796 = vadd.f32 %v744, %v780
        %v797 = vadd.f32 %v745, %v781
        %v798 = vadd.f32 %v746, %v782
        %v799 = vadd.f32 %v747, %v783
        %v800 = vadd.f32 %v748, %v784
        %v801 = vadd.f32 %v749, %v785
        %v802 = vadd.f32 %v750, %v786
        %v803 = vadd.f32 %v751, %v787
        %v804 = vadd.f32 %v752, %v788
        %v805 = vadd.f32 %v753, %v789
        %v806 = vadd.f32 %v754, %v790
        %v807 = vadd.f32 %v755, %v791
        %v808 = vadd.f32 %v756, %v792
        %v809 = vadd.f32 %v757, %v793
        %v810 = vadd.f32 %v758, %v794
        %v811 = vadd.f32 %v759, %v795
        %v812 = vld [vmem:[%s3] sm:$0xf]
        %814 = vset.pattern.permute.xlu0 0
        %815 = vperm.xlu0 %814, %v812
        %v816 = vpop.permute.xlu0 %815
        %v826 = vperm.slane %v380, 0
        %v827 = vperm.slane %v380, 4
        %v828 = vperm.slane %v381, 0
        %v829 = vperm.slane %v381, 4
        %v830 = vperm.slane %v382, 0
        %v831 = vperm.slane %v382, 4
        %v832 = vperm.slane %v383, 0
        %v833 = vperm.slane %v383, 4
        %v834 = vperm.slane %v384, 0
        %v835 = vperm.slane %v384, 4
        %v836 = vperm.slane %v385, 0
        %v837 = vperm.slane %v385, 4
        %v838 = vperm.slane %v386, 0
        %v839 = vperm.slane %v386, 4
        %v840 = vperm.slane %v387, 0
        %v841 = vperm.slane %v387, 4
        %v858 = vperm.slane %v826, 0
        %v859 = vperm.slane %v827, 0
        %v860 = vperm.slane %v828, 0
        %v861 = vperm.slane %v829, 0
        %v862 = vperm.slane %v830, 0
        %v863 = vperm.slane %v831, 0
        %v864 = vperm.slane %v832, 0
        %v865 = vperm.slane %v833, 0
        %v866 = vperm.slane %v834, 0
        %v867 = vperm.slane %v835, 0
        %v868 = vperm.slane %v836, 0
        %v869 = vperm.slane %v837, 0
        %v870 = vperm.slane %v838, 0
        %v871 = vperm.slane %v839, 0
        %v872 = vperm.slane %v840, 0
        %v873 = vperm.slane %v841, 0
        %v874 = vmul.f32 %v816, %v858
        %v875 = vmul.f32 %v816, %v859
        %v876 = vmul.f32 %v816, %v860
        %v877 = vmul.f32 %v816, %v861
        %v878 = vmul.f32 %v816, %v862
        %v879 = vmul.f32 %v816, %v863
        %v880 = vmul.f32 %v816, %v864
        %v881 = vmul.f32 %v816, %v865
        %v882 = vmul.f32 %v816, %v866
        %v883 = vmul.f32 %v816, %v867
        %v884 = vmul.f32 %v816, %v868
        %v885 = vmul.f32 %v816, %v869
        %v886 = vmul.f32 %v816, %v870
        %v887 = vmul.f32 %v816, %v871
        %v888 = vmul.f32 %v816, %v872
        %v889 = vmul.f32 %v816, %v873
        %v890 = vadd.f32 %v796, %v874
        %v891 = vadd.f32 %v797, %v875
        %v892 = vadd.f32 %v798, %v876
        %v893 = vadd.f32 %v799, %v877
        %v894 = vadd.f32 %v800, %v878
        %v895 = vadd.f32 %v801, %v879
        %v896 = vadd.f32 %v802, %v880
        %v897 = vadd.f32 %v803, %v881
        %v898 = vadd.f32 %v804, %v882
        %v899 = vadd.f32 %v805, %v883
        %v900 = vadd.f32 %v806, %v884
        %v901 = vadd.f32 %v807, %v885
        %v902 = vadd.f32 %v808, %v886
        %v903 = vadd.f32 %v809, %v887
        %v904 = vadd.f32 %v810, %v888
        %v905 = vadd.f32 %v811, %v889
        %906 = vset.pattern.permute.xlu0 1
        %907 = vperm.xlu0 %906, %v812
        %v908 = vpop.permute.xlu0 %907
        %v910 = vperm.slane %v380, 1
        %v911 = vperm.slane %v380, 5
        %v912 = vperm.slane %v381, 1
        %v913 = vperm.slane %v381, 5
        %v914 = vperm.slane %v382, 1
        %v915 = vperm.slane %v382, 5
        %v916 = vperm.slane %v383, 1
        %v917 = vperm.slane %v383, 5
        %v918 = vperm.slane %v384, 1
        %v919 = vperm.slane %v384, 5
        %v920 = vperm.slane %v385, 1
        %v921 = vperm.slane %v385, 5
        %v922 = vperm.slane %v386, 1
        %v923 = vperm.slane %v386, 5
        %v924 = vperm.slane %v387, 1
        %v925 = vperm.slane %v387, 5
        %v942 = vperm.slane %v910, 1
        %v943 = vperm.slane %v911, 1
        %v944 = vperm.slane %v912, 1
        %v945 = vperm.slane %v913, 1
        %v946 = vperm.slane %v914, 1
        %v947 = vperm.slane %v915, 1
        %v948 = vperm.slane %v916, 1
        %v949 = vperm.slane %v917, 1
        %v950 = vperm.slane %v918, 1
        %v951 = vperm.slane %v919, 1
        %v952 = vperm.slane %v920, 1
        %v953 = vperm.slane %v921, 1
        %v954 = vperm.slane %v922, 1
        %v955 = vperm.slane %v923, 1
        %v956 = vperm.slane %v924, 1
        %v957 = vperm.slane %v925, 1
        %v958 = vmul.f32 %v908, %v942
        %v959 = vmul.f32 %v908, %v943
        %v960 = vmul.f32 %v908, %v944
        %v961 = vmul.f32 %v908, %v945
        %v962 = vmul.f32 %v908, %v946
        %v963 = vmul.f32 %v908, %v947
        %v964 = vmul.f32 %v908, %v948
        %v965 = vmul.f32 %v908, %v949
        %v966 = vmul.f32 %v908, %v950
        %v967 = vmul.f32 %v908, %v951
        %v968 = vmul.f32 %v908, %v952
        %v969 = vmul.f32 %v908, %v953
        %v970 = vmul.f32 %v908, %v954
        %v971 = vmul.f32 %v908, %v955
        %v972 = vmul.f32 %v908, %v956
        %v973 = vmul.f32 %v908, %v957
        %v974 = vadd.f32 %v890, %v958
        %v975 = vadd.f32 %v891, %v959
        %v976 = vadd.f32 %v892, %v960
        %v977 = vadd.f32 %v893, %v961
        %v978 = vadd.f32 %v894, %v962
        %v979 = vadd.f32 %v895, %v963
        %v980 = vadd.f32 %v896, %v964
        %v981 = vadd.f32 %v897, %v965
        %v982 = vadd.f32 %v898, %v966
        %v983 = vadd.f32 %v899, %v967
        %v984 = vadd.f32 %v900, %v968
        %v985 = vadd.f32 %v901, %v969
        %v986 = vadd.f32 %v902, %v970
        %v987 = vadd.f32 %v903, %v971
        %v988 = vadd.f32 %v904, %v972
        %v989 = vadd.f32 %v905, %v973
        %990 = vset.pattern.permute.xlu0 2
        %991 = vperm.xlu0 %990, %v812
        %v992 = vpop.permute.xlu0 %991
        %v994 = vperm.slane %v380, 2
        %v995 = vperm.slane %v380, 6
        %v996 = vperm.slane %v381, 2
        %v997 = vperm.slane %v381, 6
        %v998 = vperm.slane %v382, 2
        %v999 = vperm.slane %v382, 6
        %v1000 = vperm.slane %v383, 2
        %v1001 = vperm.slane %v383, 6
        %v1002 = vperm.slane %v384, 2
        %v1003 = vperm.slane %v384, 6
        %v1004 = vperm.slane %v385, 2
        %v1005 = vperm.slane %v385, 6
        %v1006 = vperm.slane %v386, 2
        %v1007 = vperm.slane %v386, 6
        %v1008 = vperm.slane %v387, 2
        %v1009 = vperm.slane %v387, 6
        %v1026 = vperm.slane %v994, 2
        %v1027 = vperm.slane %v995, 2
        %v1028 = vperm.slane %v996, 2
        %v1029 = vperm.slane %v997, 2
        %v1030 = vperm.slane %v998, 2
        %v1031 = vperm.slane %v999, 2
        %v1032 = vperm.slane %v1000, 2
        %v1033 = vperm.slane %v1001, 2
        %v1034 = vperm.slane %v1002, 2
        %v1035 = vperm.slane %v1003, 2
        %v1036 = vperm.slane %v1004, 2
        %v1037 = vperm.slane %v1005, 2
        %v1038 = vperm.slane %v1006, 2
        %v1039 = vperm.slane %v1007, 2
        %v1040 = vperm.slane %v1008, 2
        %v1041 = vperm.slane %v1009, 2
        %v1042 = vmul.f32 %v992, %v1026
        %v1043 = vmul.f32 %v992, %v1027
        %v1044 = vmul.f32 %v992, %v1028
        %v1045 = vmul.f32 %v992, %v1029
        %v1046 = vmul.f32 %v992, %v1030
        %v1047 = vmul.f32 %v992, %v1031
        %v1048 = vmul.f32 %v992, %v1032
        %v1049 = vmul.f32 %v992, %v1033
        %v1050 = vmul.f32 %v992, %v1034
        %v1051 = vmul.f32 %v992, %v1035
        %v1052 = vmul.f32 %v992, %v1036
        %v1053 = vmul.f32 %v992, %v1037
        %v1054 = vmul.f32 %v992, %v1038
        %v1055 = vmul.f32 %v992, %v1039
        %v1056 = vmul.f32 %v992, %v1040
        %v1057 = vmul.f32 %v992, %v1041
        %v1058 = vadd.f32 %v974, %v1042
        %v1059 = vadd.f32 %v975, %v1043
        %v1060 = vadd.f32 %v976, %v1044
        %v1061 = vadd.f32 %v977, %v1045
        %v1062 = vadd.f32 %v978, %v1046
        %v1063 = vadd.f32 %v979, %v1047
        %v1064 = vadd.f32 %v980, %v1048
        %v1065 = vadd.f32 %v981, %v1049
        %v1066 = vadd.f32 %v982, %v1050
        %v1067 = vadd.f32 %v983, %v1051
        %v1068 = vadd.f32 %v984, %v1052
        %v1069 = vadd.f32 %v985, %v1053
        %v1070 = vadd.f32 %v986, %v1054
        %v1071 = vadd.f32 %v987, %v1055
        %v1072 = vadd.f32 %v988, %v1056
        %v1073 = vadd.f32 %v989, %v1057
        %1074 = vset.pattern.permute.xlu0 3
        %1075 = vperm.xlu0 %1074, %v812
        %v1076 = vpop.permute.xlu0 %1075
        %v1078 = vperm.slane %v380, 3
        %v1079 = vperm.slane %v380, 7
        %v1080 = vperm.slane %v381, 3
        %v1081 = vperm.slane %v381, 7
        %v1082 = vperm.slane %v382, 3
        %v1083 = vperm.slane %v382, 7
        %v1084 = vperm.slane %v383, 3
        %v1085 = vperm.slane %v383, 7
        %v1086 = vperm.slane %v384, 3
        %v1087 = vperm.slane %v384, 7
        %v1088 = vperm.slane %v385, 3
        %v1089 = vperm.slane %v385, 7
        %v1090 = vperm.slane %v386, 3
        %v1091 = vperm.slane %v386, 7
        %v1092 = vperm.slane %v387, 3
        %v1093 = vperm.slane %v387, 7
        %v1110 = vperm.slane %v1078, 3
        %v1111 = vperm.slane %v1079, 3
        %v1112 = vperm.slane %v1080, 3
        %v1113 = vperm.slane %v1081, 3
        %v1114 = vperm.slane %v1082, 3
        %v1115 = vperm.slane %v1083, 3
        %v1116 = vperm.slane %v1084, 3
        %v1117 = vperm.slane %v1085, 3
        %v1118 = vperm.slane %v1086, 3
        %v1119 = vperm.slane %v1087, 3
        %v1120 = vperm.slane %v1088, 3
        %v1121 = vperm.slane %v1089, 3
        %v1122 = vperm.slane %v1090, 3
        %v1123 = vperm.slane %v1091, 3
        %v1124 = vperm.slane %v1092, 3
        %v1125 = vperm.slane %v1093, 3
        %v1126 = vmul.f32 %v1076, %v1110
        %v1127 = vmul.f32 %v1076, %v1111
        %v1128 = vmul.f32 %v1076, %v1112
        %v1129 = vmul.f32 %v1076, %v1113
        %v1130 = vmul.f32 %v1076, %v1114
        %v1131 = vmul.f32 %v1076, %v1115
        %v1132 = vmul.f32 %v1076, %v1116
        %v1133 = vmul.f32 %v1076, %v1117
        %v1134 = vmul.f32 %v1076, %v1118
        %v1135 = vmul.f32 %v1076, %v1119
        %v1136 = vmul.f32 %v1076, %v1120
        %v1137 = vmul.f32 %v1076, %v1121
        %v1138 = vmul.f32 %v1076, %v1122
        %v1139 = vmul.f32 %v1076, %v1123
        %v1140 = vmul.f32 %v1076, %v1124
        %v1141 = vmul.f32 %v1076, %v1125
        %v1142 = vadd.f32 %v1058, %v1126
        %v1143 = vadd.f32 %v1059, %v1127
        %v1144 = vadd.f32 %v1060, %v1128
        %v1145 = vadd.f32 %v1061, %v1129
        %v1146 = vadd.f32 %v1062, %v1130
        %v1147 = vadd.f32 %v1063, %v1131
        %v1148 = vadd.f32 %v1064, %v1132
        %v1149 = vadd.f32 %v1065, %v1133
        %v1150 = vadd.f32 %v1066, %v1134
        %v1151 = vadd.f32 %v1067, %v1135
        %v1152 = vadd.f32 %v1068, %v1136
        %v1153 = vadd.f32 %v1069, %v1137
        %v1154 = vadd.f32 %v1070, %v1138
        %v1155 = vadd.f32 %v1071, %v1139
        %v1156 = vadd.f32 %v1072, %v1140
        %v1157 = vadd.f32 %v1073, %v1141
        %v1158 = vmax.f32 %v1142, 0.0
        %v1159 = vmax.f32 %v1143, 0.0
        %v1160 = vmax.f32 %v1144, 0.0
        %v1161 = vmax.f32 %v1145, 0.0
        %v1162 = vmax.f32 %v1146, 0.0
        %v1163 = vmax.f32 %v1147, 0.0
        %v1164 = vmax.f32 %v1148, 0.0
        %v1165 = vmax.f32 %v1149, 0.0
        %v1166 = vmax.f32 %v1150, 0.0
        %v1167 = vmax.f32 %v1151, 0.0
        %v1168 = vmax.f32 %v1152, 0.0
        %v1169 = vmax.f32 %v1153, 0.0
        %v1170 = vmax.f32 %v1154, 0.0
        %v1171 = vmax.f32 %v1155, 0.0
        %v1172 = vmax.f32 %v1156, 0.0
        %v1173 = vmax.f32 %v1157, 0.0
        %v1174 = vld [vmem:[#allocation2] sm:$0x1]
        %v1175 = vld [vmem:[%s5] sm:$0xf]
        %1177 = vset.pattern.permute.xlu0 0
        %1178 = vperm.xlu0 %1177, %v1175
        %v1179 = vpop.permute.xlu0 %1178
        %v1181 = vmul.f32 %v1158, %v1179
        %v1182 = vmul.f32 %v1159, %v1179
        %v1183 = vmul.f32 %v1160, %v1179
        %v1184 = vmul.f32 %v1161, %v1179
        %v1185 = vmul.f32 %v1162, %v1179
        %v1186 = vmul.f32 %v1163, %v1179
        %v1187 = vmul.f32 %v1164, %v1179
        %v1188 = vmul.f32 %v1165, %v1179
        %v1189 = vmul.f32 %v1166, %v1179
        %v1190 = vmul.f32 %v1167, %v1179
        %v1191 = vmul.f32 %v1168, %v1179
        %v1192 = vmul.f32 %v1169, %v1179
        %v1193 = vmul.f32 %v1170, %v1179
        %v1194 = vmul.f32 %v1171, %v1179
        %v1195 = vmul.f32 %v1172, %v1179
        %v1196 = vmul.f32 %v1173, %v1179
        %vm1197 = vcmask 1043456
        %v1198 = vsel %vm1197, %v1181, 0.0
        %v1199 = vrot.slane %v1198, 4
        %v1200 = vadd.f32 %v1198, %v1199
        %v1201 = vrot.slane %v1200, 2
        %v1202 = vadd.f32 %v1200, %v1201
        %v1203 = vrot.slane %v1202, 1
        %v1204 = vadd.f32 %v1202, %v1203
        %v1205 = vsel %vm1197, %v1182, 0.0
        %v1206 = vrot.slane %v1205, 4
        %v1207 = vadd.f32 %v1205, %v1206
        %v1208 = vrot.slane %v1207, 2
        %v1209 = vadd.f32 %v1207, %v1208
        %v1210 = vrot.slane %v1209, 1
        %v1211 = vadd.f32 %v1209, %v1210
        %v1212 = vsel %vm1197, %v1183, 0.0
        %v1213 = vrot.slane %v1212, 4
        %v1214 = vadd.f32 %v1212, %v1213
        %v1215 = vrot.slane %v1214, 2
        %v1216 = vadd.f32 %v1214, %v1215
        %v1217 = vrot.slane %v1216, 1
        %v1218 = vadd.f32 %v1216, %v1217
        %v1219 = vsel %vm1197, %v1184, 0.0
        %v1220 = vrot.slane %v1219, 4
        %v1221 = vadd.f32 %v1219, %v1220
        %v1222 = vrot.slane %v1221, 2
        %v1223 = vadd.f32 %v1221, %v1222
        %v1224 = vrot.slane %v1223, 1
        %v1225 = vadd.f32 %v1223, %v1224
        %v1226 = vsel %vm1197, %v1185, 0.0
        %v1227 = vrot.slane %v1226, 4
        %v1228 = vadd.f32 %v1226, %v1227
        %v1229 = vrot.slane %v1228, 2
        %v1230 = vadd.f32 %v1228, %v1229
        %v1231 = vrot.slane %v1230, 1
        %v1232 = vadd.f32 %v1230, %v1231
        %v1233 = vsel %vm1197, %v1186, 0.0
        %v1234 = vrot.slane %v1233, 4
        %v1235 = vadd.f32 %v1233, %v1234
        %v1236 = vrot.slane %v1235, 2
        %v1237 = vadd.f32 %v1235, %v1236
        %v1238 = vrot.slane %v1237, 1
        %v1239 = vadd.f32 %v1237, %v1238
        %v1240 = vsel %vm1197, %v1187, 0.0
        %v1241 = vrot.slane %v1240, 4
        %v1242 = vadd.f32 %v1240, %v1241
        %v1243 = vrot.slane %v1242, 2
        %v1244 = vadd.f32 %v1242, %v1243
        %v1245 = vrot.slane %v1244, 1
        %v1246 = vadd.f32 %v1244, %v1245
        %v1247 = vsel %vm1197, %v1188, 0.0
        %v1248 = vrot.slane %v1247, 4
        %v1249 = vadd.f32 %v1247, %v1248
        %v1250 = vrot.slane %v1249, 2
        %v1251 = vadd.f32 %v1249, %v1250
        %v1252 = vrot.slane %v1251, 1
        %v1253 = vadd.f32 %v1251, %v1252
        %v1254 = vsel %vm1197, %v1189, 0.0
        %v1255 = vrot.slane %v1254, 4
        %v1256 = vadd.f32 %v1254, %v1255
        %v1257 = vrot.slane %v1256, 2
        %v1258 = vadd.f32 %v1256, %v1257
        %v1259 = vrot.slane %v1258, 1
        %v1260 = vadd.f32 %v1258, %v1259
        %v1261 = vsel %vm1197, %v1190, 0.0
        %v1262 = vrot.slane %v1261, 4
        %v1263 = vadd.f32 %v1261, %v1262
        %v1264 = vrot.slane %v1263, 2
        %v1265 = vadd.f32 %v1263, %v1264
        %v1266 = vrot.slane %v1265, 1
        %v1267 = vadd.f32 %v1265, %v1266
        %v1268 = vsel %vm1197, %v1191, 0.0
        %v1269 = vrot.slane %v1268, 4
        %v1270 = vadd.f32 %v1268, %v1269
        %v1271 = vrot.slane %v1270, 2
        %v1272 = vadd.f32 %v1270, %v1271
        %v1273 = vrot.slane %v1272, 1
        %v1274 = vadd.f32 %v1272, %v1273
        %v1275 = vsel %vm1197, %v1192, 0.0
        %v1276 = vrot.slane %v1275, 4
        %v1277 = vadd.f32 %v1275, %v1276
        %v1278 = vrot.slane %v1277, 2
        %v1279 = vadd.f32 %v1277, %v1278
        %v1280 = vrot.slane %v1279, 1
        %v1281 = vadd.f32 %v1279, %v1280
        %v1282 = vsel %vm1197, %v1193, 0.0
        %v1283 = vrot.slane %v1282, 4
        %v1284 = vadd.f32 %v1282, %v1283
        %v1285 = vrot.slane %v1284, 2
        %v1286 = vadd.f32 %v1284, %v1285
        %v1287 = vrot.slane %v1286, 1
        %v1288 = vadd.f32 %v1286, %v1287
        %v1289 = vsel %vm1197, %v1194, 0.0
        %v1290 = vrot.slane %v1289, 4
        %v1291 = vadd.f32 %v1289, %v1290
        %v1292 = vrot.slane %v1291, 2
        %v1293 = vadd.f32 %v1291, %v1292
        %v1294 = vrot.slane %v1293, 1
        %v1295 = vadd.f32 %v1293, %v1294
        %v1296 = vsel %vm1197, %v1195, 0.0
        %v1297 = vrot.slane %v1296, 4
        %v1298 = vadd.f32 %v1296, %v1297
        %v1299 = vrot.slane %v1298, 2
        %v1300 = vadd.f32 %v1298, %v1299
        %v1301 = vrot.slane %v1300, 1
        %v1302 = vadd.f32 %v1300, %v1301
        %v1303 = vsel %vm1197, %v1196, 0.0
        %v1304 = vrot.slane %v1303, 4
        %v1305 = vadd.f32 %v1303, %v1304
        %v1306 = vrot.slane %v1305, 2
        %v1307 = vadd.f32 %v1305, %v1306
        %v1308 = vrot.slane %v1307, 1
        %v1309 = vadd.f32 %v1307, %v1308
        %1311 = vset.pattern.permute.xlu0 0
        %1312 = vperm.xlu0 %1311, %v1174
        %v1313 = vpop.permute.xlu0 %1312
        %v1315 = vperm.slane %v1313, 0
        %v1316 = vadd.f32 %v1315, %v1204
        %v1317 = vadd.f32 %v1315, %v1211
        %v1318 = vadd.f32 %v1315, %v1218
        %v1319 = vadd.f32 %v1315, %v1225
        %v1320 = vadd.f32 %v1315, %v1232
        %v1321 = vadd.f32 %v1315, %v1239
        %v1322 = vadd.f32 %v1315, %v1246
        %v1323 = vadd.f32 %v1315, %v1253
        %v1324 = vadd.f32 %v1315, %v1260
        %v1325 = vadd.f32 %v1315, %v1267
        %v1326 = vadd.f32 %v1315, %v1274
        %v1327 = vadd.f32 %v1315, %v1281
        %v1328 = vadd.f32 %v1315, %v1288
        %v1329 = vadd.f32 %v1315, %v1295
        %v1330 = vadd.f32 %v1315, %v1302
        %v1331 = vadd.f32 %v1315, %v1309
        %v1332 = vsub.f32 0.0, %v1316
        %v1333 = vsub.f32 0.0, %v1317
        %v1334 = vsub.f32 0.0, %v1318
        %v1335 = vsub.f32 0.0, %v1319
        %v1336 = vsub.f32 0.0, %v1320
        %v1337 = vsub.f32 0.0, %v1321
        %v1338 = vsub.f32 0.0, %v1322
        %v1339 = vsub.f32 0.0, %v1323
        %v1340 = vsub.f32 0.0, %v1324
        %v1341 = vsub.f32 0.0, %v1325
        %v1342 = vsub.f32 0.0, %v1326
        %v1343 = vsub.f32 0.0, %v1327
        %v1344 = vsub.f32 0.0, %v1328
        %v1345 = vsub.f32 0.0, %v1329
        %v1346 = vsub.f32 0.0, %v1330
        %v1347 = vsub.f32 0.0, %v1331
        %v1348 = vmul.f32 %v1332, 1.442695
        %v1349 = vpow.pop %v1348
        %v1350 = vmul.f32 %v1333, 1.442695
        %v1351 = vpow.pop %v1350
        %v1352 = vmul.f32 %v1334, 1.442695
        %v1353 = vpow.pop %v1352
        %v1354 = vmul.f32 %v1335, 1.442695
        %v1355 = vpow.pop %v1354
        %v1356 = vmul.f32 %v1336, 1.442695
        %v1357 = vpow.pop %v1356
        %v1358 = vmul.f32 %v1337, 1.442695
        %v1359 = vpow.pop %v1358
        %v1360 = vmul.f32 %v1338, 1.442695
        %v1361 = vpow.pop %v1360
        %v1362 = vmul.f32 %v1339, 1.442695
        %v1363 = vpow.pop %v1362
        %v1364 = vmul.f32 %v1340, 1.442695
        %v1365 = vpow.pop %v1364
        %v1366 = vmul.f32 %v1341, 1.442695
        %v1367 = vpow.pop %v1366
        %v1368 = vmul.f32 %v1342, 1.442695
        %v1369 = vpow.pop %v1368
        %v1370 = vmul.f32 %v1343, 1.442695
        %v1371 = vpow.pop %v1370
        %v1372 = vmul.f32 %v1344, 1.442695
        %v1373 = vpow.pop %v1372
        %v1374 = vmul.f32 %v1345, 1.442695
        %v1375 = vpow.pop %v1374
        %v1376 = vmul.f32 %v1346, 1.442695
        %v1377 = vpow.pop %v1376
        %v1378 = vmul.f32 %v1347, 1.442695
        %v1379 = vpow.pop %v1378
        %v1380 = vadd.f32 %v1349, 1.0
        %v1381 = vadd.f32 %v1351, 1.0
        %v1382 = vadd.f32 %v1353, 1.0
        %v1383 = vadd.f32 %v1355, 1.0
        %v1384 = vadd.f32 %v1357, 1.0
        %v1385 = vadd.f32 %v1359, 1.0
        %v1386 = vadd.f32 %v1361, 1.0
        %v1387 = vadd.f32 %v1363, 1.0
        %v1388 = vadd.f32 %v1365, 1.0
        %v1389 = vadd.f32 %v1367, 1.0
        %v1390 = vadd.f32 %v1369, 1.0
        %v1391 = vadd.f32 %v1371, 1.0
        %v1392 = vadd.f32 %v1373, 1.0
        %v1393 = vadd.f32 %v1375, 1.0
        %v1394 = vadd.f32 %v1377, 1.0
        %v1395 = vadd.f32 %v1379, 1.0
        %v1396 = vrcp.pop %v1380
        %v1397 = vmul.f32 %v1380, %v1396
        %v1398 = vsub.f32 1.0, %v1397
        %v1399 = vmul.f32 %v1396, %v1398
        %v1400 = vadd.f32 %v1396, %v1399
        %vm1401 = vweird.f32 %v1380
        %vm1402 = vweird.f32 %v1396
        %vm1403 = vmor %vm1401, %vm1402
        %v1404 = vsel %vm1403, %v1396, %v1400
        %v1405 = vand.u32 2147483647, %v1380
        %vm1406 = vcmp.eq.f32.partialorder %v1405, 8.507059e+37
        %v1407 = vand.u32 %v1380, 2147483648
        %v1408 = vor.u32 1.1754944e-38, %v1407
        %v1409 = vsel %vm1406, %v1408, %v1404
        %v1410 = vmul.f32 1.0, %v1409
        %v1411 = vrcp.pop %v1381
        %v1412 = vmul.f32 %v1381, %v1411
        %v1413 = vsub.f32 1.0, %v1412
        %v1414 = vmul.f32 %v1411, %v1413
        %v1415 = vadd.f32 %v1411, %v1414
        %vm1416 = vweird.f32 %v1381
        %vm1417 = vweird.f32 %v1411
        %vm1418 = vmor %vm1416, %vm1417
        %v1419 = vsel %vm1418, %v1411, %v1415
        %v1420 = vand.u32 2147483647, %v1381
        %vm1421 = vcmp.eq.f32.partialorder %v1420, 8.507059e+37
        %v1422 = vand.u32 %v1381, 2147483648
        %v1423 = vor.u32 1.1754944e-38, %v1422
        %v1424 = vsel %vm1421, %v1423, %v1419
        %v1425 = vmul.f32 1.0, %v1424
        %v1426 = vrcp.pop %v1382
        %v1427 = vmul.f32 %v1382, %v1426
        %v1428 = vsub.f32 1.0, %v1427
        %v1429 = vmul.f32 %v1426, %v1428
        %v1430 = vadd.f32 %v1426, %v1429
        %vm1431 = vweird.f32 %v1382
        %vm1432 = vweird.f32 %v1426
        %vm1433 = vmor %vm1431, %vm1432
        %v1434 = vsel %vm1433, %v1426, %v1430
        %v1435 = vand.u32 2147483647, %v1382
        %vm1436 = vcmp.eq.f32.partialorder %v1435, 8.507059e+37
        %v1437 = vand.u32 %v1382, 2147483648
        %v1438 = vor.u32 1.1754944e-38, %v1437
        %v1439 = vsel %vm1436, %v1438, %v1434
        %v1440 = vmul.f32 1.0, %v1439
        %v1441 = vrcp.pop %v1383
        %v1442 = vmul.f32 %v1383, %v1441
        %v1443 = vsub.f32 1.0, %v1442
        %v1444 = vmul.f32 %v1441, %v1443
        %v1445 = vadd.f32 %v1441, %v1444
        %vm1446 = vweird.f32 %v1383
        %vm1447 = vweird.f32 %v1441
        %vm1448 = vmor %vm1446, %vm1447
        %v1449 = vsel %vm1448, %v1441, %v1445
        %v1450 = vand.u32 2147483647, %v1383
        %vm1451 = vcmp.eq.f32.partialorder %v1450, 8.507059e+37
        %v1452 = vand.u32 %v1383, 2147483648
        %v1453 = vor.u32 1.1754944e-38, %v1452
        %v1454 = vsel %vm1451, %v1453, %v1449
        %v1455 = vmul.f32 1.0, %v1454
        %v1456 = vrcp.pop %v1384
        %v1457 = vmul.f32 %v1384, %v1456
        %v1458 = vsub.f32 1.0, %v1457
        %v1459 = vmul.f32 %v1456, %v1458
        %v1460 = vadd.f32 %v1456, %v1459
        %vm1461 = vweird.f32 %v1384
        %vm1462 = vweird.f32 %v1456
        %vm1463 = vmor %vm1461, %vm1462
        %v1464 = vsel %vm1463, %v1456, %v1460
        %v1465 = vand.u32 2147483647, %v1384
        %vm1466 = vcmp.eq.f32.partialorder %v1465, 8.507059e+37
        %v1467 = vand.u32 %v1384, 2147483648
        %v1468 = vor.u32 1.1754944e-38, %v1467
        %v1469 = vsel %vm1466, %v1468, %v1464
        %v1470 = vmul.f32 1.0, %v1469
        %v1471 = vrcp.pop %v1385
        %v1472 = vmul.f32 %v1385, %v1471
        %v1473 = vsub.f32 1.0, %v1472
        %v1474 = vmul.f32 %v1471, %v1473
        %v1475 = vadd.f32 %v1471, %v1474
        %vm1476 = vweird.f32 %v1385
        %vm1477 = vweird.f32 %v1471
        %vm1478 = vmor %vm1476, %vm1477
        %v1479 = vsel %vm1478, %v1471, %v1475
        %v1480 = vand.u32 2147483647, %v1385
        %vm1481 = vcmp.eq.f32.partialorder %v1480, 8.507059e+37
        %v1482 = vand.u32 %v1385, 2147483648
        %v1483 = vor.u32 1.1754944e-38, %v1482
        %v1484 = vsel %vm1481, %v1483, %v1479
        %v1485 = vmul.f32 1.0, %v1484
        %v1486 = vrcp.pop %v1386
        %v1487 = vmul.f32 %v1386, %v1486
        %v1488 = vsub.f32 1.0, %v1487
        %v1489 = vmul.f32 %v1486, %v1488
        %v1490 = vadd.f32 %v1486, %v1489
        %vm1491 = vweird.f32 %v1386
        %vm1492 = vweird.f32 %v1486
        %vm1493 = vmor %vm1491, %vm1492
        %v1494 = vsel %vm1493, %v1486, %v1490
        %v1495 = vand.u32 2147483647, %v1386
        %vm1496 = vcmp.eq.f32.partialorder %v1495, 8.507059e+37
        %v1497 = vand.u32 %v1386, 2147483648
        %v1498 = vor.u32 1.1754944e-38, %v1497
        %v1499 = vsel %vm1496, %v1498, %v1494
        %v1500 = vmul.f32 1.0, %v1499
        %v1501 = vrcp.pop %v1387
        %v1502 = vmul.f32 %v1387, %v1501
        %v1503 = vsub.f32 1.0, %v1502
        %v1504 = vmul.f32 %v1501, %v1503
        %v1505 = vadd.f32 %v1501, %v1504
        %vm1506 = vweird.f32 %v1387
        %vm1507 = vweird.f32 %v1501
        %vm1508 = vmor %vm1506, %vm1507
        %v1509 = vsel %vm1508, %v1501, %v1505
        %v1510 = vand.u32 2147483647, %v1387
        %vm1511 = vcmp.eq.f32.partialorder %v1510, 8.507059e+37
        %v1512 = vand.u32 %v1387, 2147483648
        %v1513 = vor.u32 1.1754944e-38, %v1512
        %v1514 = vsel %vm1511, %v1513, %v1509
        %v1515 = vmul.f32 1.0, %v1514
        %v1516 = vrcp.pop %v1388
        %v1517 = vmul.f32 %v1388, %v1516
        %v1518 = vsub.f32 1.0, %v1517
        %v1519 = vmul.f32 %v1516, %v1518
        %v1520 = vadd.f32 %v1516, %v1519
        %vm1521 = vweird.f32 %v1388
        %vm1522 = vweird.f32 %v1516
        %vm1523 = vmor %vm1521, %vm1522
        %v1524 = vsel %vm1523, %v1516, %v1520
        %v1525 = vand.u32 2147483647, %v1388
        %vm1526 = vcmp.eq.f32.partialorder %v1525, 8.507059e+37
        %v1527 = vand.u32 %v1388, 2147483648
        %v1528 = vor.u32 1.1754944e-38, %v1527
        %v1529 = vsel %vm1526, %v1528, %v1524
        %v1530 = vmul.f32 1.0, %v1529
        %v1531 = vrcp.pop %v1389
        %v1532 = vmul.f32 %v1389, %v1531
        %v1533 = vsub.f32 1.0, %v1532
        %v1534 = vmul.f32 %v1531, %v1533
        %v1535 = vadd.f32 %v1531, %v1534
        %vm1536 = vweird.f32 %v1389
        %vm1537 = vweird.f32 %v1531
        %vm1538 = vmor %vm1536, %vm1537
        %v1539 = vsel %vm1538, %v1531, %v1535
        %v1540 = vand.u32 2147483647, %v1389
        %vm1541 = vcmp.eq.f32.partialorder %v1540, 8.507059e+37
        %v1542 = vand.u32 %v1389, 2147483648
        %v1543 = vor.u32 1.1754944e-38, %v1542
        %v1544 = vsel %vm1541, %v1543, %v1539
        %v1545 = vmul.f32 1.0, %v1544
        %v1546 = vrcp.pop %v1390
        %v1547 = vmul.f32 %v1390, %v1546
        %v1548 = vsub.f32 1.0, %v1547
        %v1549 = vmul.f32 %v1546, %v1548
        %v1550 = vadd.f32 %v1546, %v1549
        %vm1551 = vweird.f32 %v1390
        %vm1552 = vweird.f32 %v1546
        %vm1553 = vmor %vm1551, %vm1552
        %v1554 = vsel %vm1553, %v1546, %v1550
        %v1555 = vand.u32 2147483647, %v1390
        %vm1556 = vcmp.eq.f32.partialorder %v1555, 8.507059e+37
        %v1557 = vand.u32 %v1390, 2147483648
        %v1558 = vor.u32 1.1754944e-38, %v1557
        %v1559 = vsel %vm1556, %v1558, %v1554
        %v1560 = vmul.f32 1.0, %v1559
        %v1561 = vrcp.pop %v1391
        %v1562 = vmul.f32 %v1391, %v1561
        %v1563 = vsub.f32 1.0, %v1562
        %v1564 = vmul.f32 %v1561, %v1563
        %v1565 = vadd.f32 %v1561, %v1564
        %vm1566 = vweird.f32 %v1391
        %vm1567 = vweird.f32 %v1561
        %vm1568 = vmor %vm1566, %vm1567
        %v1569 = vsel %vm1568, %v1561, %v1565
        %v1570 = vand.u32 2147483647, %v1391
        %vm1571 = vcmp.eq.f32.partialorder %v1570, 8.507059e+37
        %v1572 = vand.u32 %v1391, 2147483648
        %v1573 = vor.u32 1.1754944e-38, %v1572
        %v1574 = vsel %vm1571, %v1573, %v1569
        %v1575 = vmul.f32 1.0, %v1574
        %v1576 = vrcp.pop %v1392
        %v1577 = vmul.f32 %v1392, %v1576
        %v1578 = vsub.f32 1.0, %v1577
        %v1579 = vmul.f32 %v1576, %v1578
        %v1580 = vadd.f32 %v1576, %v1579
        %vm1581 = vweird.f32 %v1392
        %vm1582 = vweird.f32 %v1576
        %vm1583 = vmor %vm1581, %vm1582
        %v1584 = vsel %vm1583, %v1576, %v1580
        %v1585 = vand.u32 2147483647, %v1392
        %vm1586 = vcmp.eq.f32.partialorder %v1585, 8.507059e+37
        %v1587 = vand.u32 %v1392, 2147483648
        %v1588 = vor.u32 1.1754944e-38, %v1587
        %v1589 = vsel %vm1586, %v1588, %v1584
        %v1590 = vmul.f32 1.0, %v1589
        %v1591 = vrcp.pop %v1393
        %v1592 = vmul.f32 %v1393, %v1591
        %v1593 = vsub.f32 1.0, %v1592
        %v1594 = vmul.f32 %v1591, %v1593
        %v1595 = vadd.f32 %v1591, %v1594
        %vm1596 = vweird.f32 %v1393
        %vm1597 = vweird.f32 %v1591
        %vm1598 = vmor %vm1596, %vm1597
        %v1599 = vsel %vm1598, %v1591, %v1595
        %v1600 = vand.u32 2147483647, %v1393
        %vm1601 = vcmp.eq.f32.partialorder %v1600, 8.507059e+37
        %v1602 = vand.u32 %v1393, 2147483648
        %v1603 = vor.u32 1.1754944e-38, %v1602
        %v1604 = vsel %vm1601, %v1603, %v1599
        %v1605 = vmul.f32 1.0, %v1604
        %v1606 = vrcp.pop %v1394
        %v1607 = vmul.f32 %v1394, %v1606
        %v1608 = vsub.f32 1.0, %v1607
        %v1609 = vmul.f32 %v1606, %v1608
        %v1610 = vadd.f32 %v1606, %v1609
        %vm1611 = vweird.f32 %v1394
        %vm1612 = vweird.f32 %v1606
        %vm1613 = vmor %vm1611, %vm1612
        %v1614 = vsel %vm1613, %v1606, %v1610
        %v1615 = vand.u32 2147483647, %v1394
        %vm1616 = vcmp.eq.f32.partialorder %v1615, 8.507059e+37
        %v1617 = vand.u32 %v1394, 2147483648
        %v1618 = vor.u32 1.1754944e-38, %v1617
        %v1619 = vsel %vm1616, %v1618, %v1614
        %v1620 = vmul.f32 1.0, %v1619
        %v1621 = vrcp.pop %v1395
        %v1622 = vmul.f32 %v1395, %v1621
        %v1623 = vsub.f32 1.0, %v1622
        %v1624 = vmul.f32 %v1621, %v1623
        %v1625 = vadd.f32 %v1621, %v1624
        %vm1626 = vweird.f32 %v1395
        %vm1627 = vweird.f32 %v1621
        %vm1628 = vmor %vm1626, %vm1627
        %v1629 = vsel %vm1628, %v1621, %v1625
        %v1630 = vand.u32 2147483647, %v1395
        %vm1631 = vcmp.eq.f32.partialorder %v1630, 8.507059e+37
        %v1632 = vand.u32 %v1395, 2147483648
        %v1633 = vor.u32 1.1754944e-38, %v1632
        %v1634 = vsel %vm1631, %v1633, %v1629
        %v1635 = vmul.f32 1.0, %v1634
        %v1652 = vrot.slane %v1425, 4
        %v1653 = vrot.slane %v1455, 4
        %v1654 = vrot.slane %v1485, 4
        %v1655 = vrot.slane %v1515, 4
        %v1656 = vrot.slane %v1545, 4
        %v1657 = vrot.slane %v1575, 4
        %v1658 = vrot.slane %v1605, 4
        %v1659 = vrot.slane %v1635, 4
        %v1660 = vsel %vm1197, %v1410, %v1652
        %v1661 = vsel %vm1197, %v1440, %v1653
        %v1662 = vsel %vm1197, %v1470, %v1654
        %v1663 = vsel %vm1197, %v1500, %v1655
        %v1664 = vsel %vm1197, %v1530, %v1656
        %v1665 = vsel %vm1197, %v1560, %v1657
        %v1666 = vsel %vm1197, %v1590, %v1658
        %v1667 = vsel %vm1197, %v1620, %v1659
        %v1676 = vmul.f32 %v380, %v1660
        %v1677 = vmul.f32 %v381, %v1661
        %v1678 = vmul.f32 %v382, %v1662
        %v1679 = vmul.f32 %v383, %v1663
        %v1680 = vmul.f32 %v384, %v1664
        %v1681 = vmul.f32 %v385, %v1665
        %v1682 = vmul.f32 %v386, %v1666
        %v1683 = vmul.f32 %v387, %v1667
        %1684 = vst [vmem:[%s360] sm:$0xff] %v1676
        %1685 = vst [vmem:[%s360 + $0x8] sm:$0xff] %v1677
        %1686 = vst [vmem:[%s360 + $0x10] sm:$0xff] %v1678
        %1687 = vst [vmem:[%s360 + $0x18] sm:$0xff] %v1679
        %1688 = vst [vmem:[%s360 + $0x20] sm:$0xff] %v1680
        %1689 = vst [vmem:[%s360 + $0x28] sm:$0xff] %v1681
        %1690 = vst [vmem:[%s360 + $0x30] sm:$0xff] %v1682
        %1691 = vst [vmem:[%s360 + $0x38] sm:$0xff] %v1683
        %s1692 = sand.u32 %s212, 1
        %s1693 = scalar_lea.sflag [#allocation5], %s1692
        %s1694 = sand.u32 %s212, 1
        %s1695 = smul.addr %s1694, 64
        %s1696 = scalar_lea.vmem [#allocation8], %s1695
        // Predicated region
        $region57: #{tpu_custom_call.1} parent=47 // pred_check
          %p1697 = pneg %p222
        $region58: #{tpu_custom_call.1} parent=47 // pred_check_branch
          %1699 = sbr.rel (%p1697) target = $region60
        $region59: #{tpu_custom_call.1} parent=47 // pred_region
          %s1700 = smul.u32 16, %s34
          %1702 = vsyncadd %s1693, 0
          %s1703 = smul.addr %s33, 32
          %s1704 = sadd.s32 %s1700, %s1703
          %s1705 = smul.addr %s1704, 4
          %s1706 = scalar_lea.hbm %s7, %s1705
          %s1708 = sshll.u32 %s1696, 4
          %s1709 = int_to_ptr.vmem [resolvable:$true] %s1708
          %s1710 = sshll.u32 %s1706, 4
          %s1711 = int_to_ptr.hbm [resolvable:$true] %s1710
          %1713 = dma.vmem_to_hbm [thread:$0]  %s1709, 1024, %s1711, %s1693
        $region60: #{tpu_custom_call.1} parent=47 // pred_fallthru
          _
      $region48: #{tpu_custom_call.1} parent=5 // pred_fallthru
        _
      %p1714 = scmp.le.s32.totalorder 2, %s24
      // Predicated region
      $region61: #{tpu_custom_call.1} parent=5 // pred_check
        %p1715 = pneg %p1714
      $region62: #{tpu_custom_call.1} parent=5 // pred_check_branch
        %1717 = sbr.rel (%p1715) target = $region64
      $region63: #{tpu_custom_call.1} parent=5 // pred_region
        %s1718 = ssub.s32 %s24, 2
        // Predicated region
        $region65: #{tpu_custom_call.1} parent=63 // pred_check
          %p1719 = pneg %p228
        $region66: #{tpu_custom_call.1} parent=63 // pred_check_branch
          %1721 = sbr.rel (%p1719) target = $region68
        $region67: #{tpu_custom_call.1} parent=63 // pred_region
          %s1722 = sand.u32 %s213, 1
          %s1723 = scalar_lea.sflag [#allocation5], %s1722
          %s1724 = sand.u32 %s213, 1
          %s1725 = smul.addr %s1724, 64
          %s1726 = scalar_lea.vmem [#allocation8], %s1725
          %1728 = dma.done %s1723, 1024
        $region68: #{tpu_custom_call.1} parent=63 // pred_fallthru
          _
      $region64: #{tpu_custom_call.1} parent=5 // pred_fallthru
        _
    $region6: #{tpu_custom_call.1} parent=1 // loop_footer
      %s28 = sadd.s32 1, %s24
    $region7: #{tpu_custom_call.1} parent=1 // loop_footer_branch
      %23 = sbr.rel target = $region3
    $region8: #{tpu_custom_call.1} parent=1 // loop_exit
      _
    %1729 = vsyncpa [#allocation4], 1
    %s1730 = scalar_lea.sflag [#allocation4], 1
    %1731 = vsyncpa %s1730, 1
    %1732 = vsyncpa [#allocation7], 1
    %s1733 = scalar_lea.sflag [#allocation7], 1
    %1734 = vsyncpa %s1733, 1
    %1735 = vsyncpa [#allocation5], 1
    %s1736 = scalar_lea.sflag [#allocation5], 1
    %1737 = vsyncpa %s1736, 1

</llo_original>
